<compile_context>
chip_gen: v7x
topology: tpu7x:2x2x1
jax: 0.10.0
libtpu: 0.0.40
codegen_flags: <defaults>
</compile_context>

<pallas_src>
import functools
import math

import numpy as np

import jax
import jax.numpy as jnp
from jax.experimental import pallas as pl
from jax.experimental.pallas import tpu as pltpu


def _sage_layer_kernel(kidx_ref, nnz_ref, a_ref, hk_ref, hs_ref, ws_ref, wn_ref,
                       b_ref, o_ref, acc_ref, self_ref, *, apply_relu: bool):
    """Fused SAGEConv layer, tiled over (destination rows i, nonzero k-blocks kk).

    kidx_ref: [n_i * max_nnz] int32 SMEM -- k-block index for each (i, kk)
    nnz_ref : [n_i]           int32 SMEM -- number of nonzero k-blocks per row tile
    a_ref   : [tm, tk]  bf16 adjacency block (row-normalized)
    hk_ref  : [tk, F]   bf16 neighbour-feature rows for this k-block
    hs_ref  : [tm, F]   bf16 self-feature rows for this row tile
    ws_ref  : [F, Fo]   bf16 self weight      wn_ref: [F, Fo] bf16 neighbour weight
    b_ref   : [1, Fo]   f32 bias
    o_ref   : [tm, Fo]  output tile
    acc_ref : [tm, F]   f32 aggregation accumulator (scratch)
    self_ref: [tm, Fo]  f32 self-path partial (scratch)
    """
    i = pl.program_id(0)
    kk = pl.program_id(1)

    @pl.when(kk == 0)
    def _():
        acc_ref[...] = jnp.zeros_like(acc_ref)
        # Self path computed up front so it overlaps with the A / H pipeline
        # instead of piling onto the last step.
        self_ref[...] = (jnp.dot(hs_ref[...], ws_ref[...],
                                 preferred_element_type=jnp.float32)
                         + b_ref[...].astype(jnp.float32))

    # Only real nonzero blocks do MXU work; padded steps (kk >= nnz) repeat the
    # previous block index so they also cost no DMA.
    @pl.when(kk < nnz_ref[i])
    def _():
        acc_ref[...] += jnp.dot(a_ref[...], hk_ref[...],
                                preferred_element_type=jnp.float32)

    @pl.when(kk == pl.num_programs(1) - 1)
    def _():
        out = self_ref[...] + jnp.dot(acc_ref[...].astype(jnp.bfloat16),
                                      wn_ref[...],
                                      preferred_element_type=jnp.float32)
        if apply_relu:
            out = jnp.maximum(out, 0.0)
        o_ref[...] = out.astype(o_ref.dtype)


def _vmem_limit_bytes(est):
    """Generation-aware VMEM budget: ~75% of capacity (96 MiB v5e/v6e, 48 MiB v7x)."""
    cap = 64 * 1024 * 1024
    try:
        cap = int(pltpu.get_tpu_info().vmem_capacity_bytes)
    except Exception:
        pass
    ceiling = cap * 3 // 4
    return int(max(min(4 * est, ceiling), min(32 * 1024 * 1024, ceiling)))


def sage_conv(a, h, w_self, w_neigh, bias, kidx, nnz, *, max_nnz, nnz_blocks,
              apply_relu, out_dtype, tm, tk):
    """out[Np, Fo] = h @ w_self + (a @ h) @ w_neigh + bias (+ relu).

    `a` bf16 row-normalized adjacency [Np, Np]; `h` bf16 [Np, F]; weights bf16;
    `kidx`/`nnz` describe the nonzero adjacency block structure.
    """
    Np, Fin = h.shape
    Fout = w_self.shape[1]
    assert a.shape == (Np, Np) and Np % tm == 0 and Np % tk == 0
    n_i = Np // tm

    kernel = functools.partial(_sage_layer_kernel, apply_relu=apply_relu)

    out_bytes = jnp.dtype(out_dtype).itemsize
    est = (2 * tm * tk * 2            # A tile (bf16, double-buffered)
           + 2 * tk * Fin * 2         # neighbour H tile (bf16)
           + 2 * tm * Fin * 2         # self H tile (bf16)
           + 2 * 2 * Fin * Fout * 2   # two bf16 weight blocks
           + 2 * Fout * 4             # bias
           + 2 * tm * Fout * out_bytes  # output tile
           + tm * Fin * 4             # aggregation accumulator
           + tm * Fout * 4)           # self-path scratch
    vmem_limit = _vmem_limit_bytes(est)

    cost = pl.CostEstimate(
        flops=int(2 * nnz_blocks * tm * tk * Fin + 4 * Np * Fin * Fout),
        transcendentals=0,
        bytes_accessed=int(nnz_blocks * (tm * tk + tk * Fin) * 2   # A + hk streams
                           + Np * Fin * 2                          # self H
                           + 2 * Fin * Fout * 2 + Fout * 4         # weights + bias
                           + Np * Fout * out_bytes),               # output
    )

    def a_map(i, kk, kidx_ref, nnz_ref):
        return (i, kidx_ref[i * max_nnz + kk])

    def hk_map(i, kk, kidx_ref, nnz_ref):
        return (kidx_ref[i * max_nnz + kk], 0)

    return pl.pallas_call(
        kernel,
        out_shape=jax.ShapeDtypeStruct((Np, Fout), out_dtype),
        grid_spec=pltpu.PrefetchScalarGridSpec(
            num_scalar_prefetch=2,                 # kidx, nnz -> SMEM
            grid=(n_i, max_nnz),                   # rows parallel, nz-blocks last
            in_specs=[
                pl.BlockSpec((tm, tk), a_map),                               # A block
                pl.BlockSpec((tk, Fin), hk_map),                             # neighbour H
                pl.BlockSpec((tm, Fin), lambda i, kk, kidx, nnz: (i, 0)),    # self H
                pl.BlockSpec((Fin, Fout), lambda i, kk, kidx, nnz: (0, 0)),  # W_self
                pl.BlockSpec((Fin, Fout), lambda i, kk, kidx, nnz: (0, 0)),  # W_neigh
                pl.BlockSpec((1, Fout), lambda i, kk, kidx, nnz: (0, 0)),    # bias
            ],
            out_specs=pl.BlockSpec((tm, Fout), lambda i, kk, kidx, nnz: (i, 0)),
            scratch_shapes=[pltpu.VMEM((tm, Fin), jnp.float32),    # aggregation acc
                            pltpu.VMEM((tm, Fout), jnp.float32)],  # self path
        ),
        compiler_params=pltpu.CompilerParams(
            dimension_semantics=("parallel", "arbitrary"),
            vmem_limit_bytes=vmem_limit),
        cost_estimate=cost,
    )(kidx, nnz, a, h, h, w_self, w_neigh, bias)


def _round_up(x, m):
    return (x + m - 1) // m * m


def _pad2(x, rows, cols):
    r, c = x.shape
    return jnp.pad(x, ((0, rows - r), (0, cols - c)))


def _build_block_index(a_np, tm, tk):
    """Per-row-tile lists of nonzero k-block indices (host-side, from f32 A)."""
    Np = a_np.shape[0]
    n_i, n_k = Np // tm, Np // tk
    mask = (a_np != 0).reshape(n_i, tm, n_k, tk).any(axis=(1, 3))
    nnz = mask.sum(axis=1).astype(np.int32)
    max_nnz = max(int(nnz.max()), 1) if nnz.size else 1
    kidx = np.zeros((n_i, max_nnz), np.int32)
    for i in range(n_i):
        nz = np.flatnonzero(mask[i])
        if nz.size:
            kidx[i, :nz.size] = nz
            kidx[i, nz.size:] = nz[-1]   # repeat last index -> padded steps dedup DMA
    return (jnp.asarray(kidx.reshape(-1)), jnp.asarray(nnz),
            max_nnz, int(mask.sum()))


def sage_forward(a, x, params, *, tm=256, tk=512, lane=128):
    """Two-layer GraphSAGE forward (eval mode: dropout is identity).

    Pads nodes to the tile grain and feature dims to multiples of 128
    (lane-dense outputs / full MXU columns); slices the padding off at the end.
    """
    N, in_feats = x.shape
    n_hidden = params["w_self1"].shape[1]
    n_classes = params["w_self2"].shape[1]

    n128 = _round_up(N, lane)
    tm = min(tm, n128)
    tk = min(tk, n128)
    grain = math.lcm(tm, tk)
    Np = _round_up(N, grain)
    f_in = _round_up(in_feats, lane)
    f_hid = _round_up(n_hidden, lane)
    f_out = _round_up(n_classes, lane)

    # Block structure computed once (host-side, from the f32 adjacency so no
    # edge weight can flush to zero in bf16) and shared by both layers.
    a_np = np.zeros((Np, Np), np.float32)
    a_np[:N, :N] = np.asarray(a, dtype=np.float32)
    kidx, nnz, max_nnz, nnz_blocks = _build_block_index(a_np, tm, tk)

    a_p = jnp.asarray(a_np, dtype=jnp.bfloat16)            # bf16 adjacency stream
    x_p = _pad2(x, Np, f_in).astype(jnp.bfloat16)           # bf16 feature stream

    ws1 = _pad2(params["w_self1"], f_in, f_hid).astype(jnp.bfloat16)
    wn1 = _pad2(params["w_neigh1"], f_in, f_hid).astype(jnp.bfloat16)
    b1 = _pad2(params["b1"], 1, f_hid)
    ws2 = _pad2(params["w_self2"], f_hid, f_out).astype(jnp.bfloat16)
    wn2 = _pad2(params["w_neigh2"], f_hid, f_out).astype(jnp.bfloat16)
    b2 = _pad2(params["b2"], 1, f_out)

    h = sage_conv(a_p, x_p, ws1, wn1, b1, kidx, nnz, max_nnz=max_nnz,
                  nnz_blocks=nnz_blocks, apply_relu=True,
                  out_dtype=jnp.bfloat16, tm=tm, tk=tk)
    # TODO(synk): nn.Dropout(0.5) is a no-op in eval mode; training-mode
    # stochastic dropout is omitted.
    h = sage_conv(a_p, h, ws2, wn2, b2, kidx, nnz, max_nnz=max_nnz,
                  nnz_blocks=nnz_blocks, apply_relu=False,
                  out_dtype=jnp.float32, tm=tm, tk=tk)
    return h[:N, :n_classes]


def _xavier_uniform(key, fan_in, fan_out):
    limit = jnp.sqrt(6.0 / (fan_in + fan_out))
    return jax.random.uniform(key, (fan_in, fan_out), jnp.float32,
                              minval=-limit, maxval=limit)


def build_params(in_feats, n_hidden, n_classes, key):
    k1, k2, k3, k4 = jax.random.split(key, 4)
    return {
        "w_self1": _xavier_uniform(k1, in_feats, n_hidden),
        "w_neigh1": _xavier_uniform(k2, in_feats, n_hidden),
        "b1": jnp.zeros((1, n_hidden), jnp.float32),
        "w_self2": _xavier_uniform(k3, n_hidden, n_classes),
        "w_neigh2": _xavier_uniform(k4, n_hidden, n_classes),
        "b2": jnp.zeros((1, n_classes), jnp.float32),
    }


def build_mean_adjacency(n_nodes, degree=3):
    """Deterministic ring graph: node i has neighbours (i+1..i+degree) % N.
    Rows are normalized by degree so A @ H is the neighbour mean."""
    idx = jnp.arange(n_nodes)
    a = jnp.zeros((n_nodes, n_nodes), jnp.float32)
    for d in range(1, degree + 1):
        a = a.at[idx, (idx + d) % n_nodes].set(1.0)
    deg = jnp.sum(a, axis=1, keepdims=True)
    return a / jnp.maximum(deg, 1.0)


if __name__ == "__main__":
    N = 256          # number of nodes
    in_feats = 32
    n_hidden = 64
    n_classes = 16

    key = jax.random.PRNGKey(0)
    kx, kp = jax.random.split(key)

    x = jax.random.normal(kx, (N, in_feats), jnp.float32)
    a = build_mean_adjacency(N, degree=3)
    params = build_params(in_feats, n_hidden, n_classes, kp)

    # Small explicit tiles for the tiny demo graph so the nonzero-block grid is
    # actually exercised (2 row tiles x 2 nonzero k-blocks each); defaults stay
    # at the large-graph-optimal 256/512.
    out = sage_forward(a, x, params, tm=128, tk=128)
    out = jax.block_until_ready(out)

    # Plain-JAX reference mimicking the kernel's bf16 operand rounding
    # (f32 accumulation, layer-1 activations round-trip through bf16).
    def ref_layer(h, ws, wn, b, relu):
        hb = h.astype(jnp.bfloat16)
        agg = jax.lax.dot(a.astype(jnp.bfloat16), hb,
                          preferred_element_type=jnp.float32)
        o = (jax.lax.dot(hb, ws.astype(jnp.bfloat16),
                         preferred_element_type=jnp.float32)
             + jax.lax.dot(agg.astype(jnp.bfloat16), wn.astype(jnp.bfloat16),
                           preferred_element_type=jnp.float32)
             + b)
        return jnp.maximum(o, 0.0) if relu else o

    r1 = ref_layer(x, params["w_self1"], params["w_neigh1"], params["b1"], True)
    r1 = r1.astype(jnp.bfloat16).astype(jnp.float32)
    ref = ref_layer(r1, params["w_self2"], params["w_neigh2"], params["b2"], False)

    assert out.shape == (N, n_classes)
    assert bool(jnp.all(jnp.isfinite(out)))
    assert jnp.allclose(out, ref, atol=5e-2, rtol=5e-2), \
        float(jnp.max(jnp.abs(out - ref)))

    print("KERNEL_OK")
</pallas_src>

<mosaic_0001>
module attributes {stable_mosaic.version = 11 : i64} {
  func.func @_sage_layer_kernel(%arg0: i32, %arg1: i32, %arg2: memref<4xi32, #tpu.memory_space<smem>>, %arg3: memref<2xi32, #tpu.memory_space<smem>>, %arg4: memref<128x128xbf16, #tpu.memory_space<vmem>>, %arg5: memref<128x128xbf16, #tpu.memory_space<vmem>>, %arg6: memref<128x128xbf16, #tpu.memory_space<vmem>>, %arg7: memref<128x128xbf16, #tpu.memory_space<vmem>>, %arg8: memref<128x128xbf16, #tpu.memory_space<vmem>>, %arg9: memref<1x128xf32, #tpu.memory_space<vmem>>, %arg10: memref<128x128xbf16, #tpu.memory_space<vmem>>, %arg11: memref<128x128xf32, #tpu.memory_space<vmem>>, %arg12: memref<128x128xf32, #tpu.memory_space<vmem>>) attributes {dimension_semantics = [#tpu.dimension_semantics<parallel>, #tpu.dimension_semantics<arbitrary>], iteration_bounds = array<i64: 2, 2>, scalar_prefetch = 2 : i64, scratch_operands = 2 : i64, tpu.core_type = #tpu.core_type<tc>, window_params = [{transform_indices = @transform_0, window_bounds = array<i64: 128, 128>}, {transform_indices = @transform_1, window_bounds = array<i64: 128, 128>}, {transform_indices = @transform_2, window_bounds = array<i64: 128, 128>}, {pipeline_mode = #tpu.pipeline_mode<synchronous>, transform_indices = @transform_3, window_bounds = array<i64: 128, 128>}, {pipeline_mode = #tpu.pipeline_mode<synchronous>, transform_indices = @transform_4, window_bounds = array<i64: 128, 128>}, {pipeline_mode = #tpu.pipeline_mode<synchronous>, transform_indices = @transform_5, window_bounds = array<i64: 1, 128>}, {transform_indices = @transform_6, window_bounds = array<i64: 128, 128>}]} {
    %c0_i32 = arith.constant 0 : i32
    %0 = arith.cmpi eq, %arg1, %c0_i32 : i32
    %1 = arith.extui %0 : i1 to i32
    %c0_i32_0 = arith.constant 0 : i32
    %2 = arith.cmpi ne, %1, %c0_i32_0 : i32
    scf.if %2 {
      %cst = arith.constant 0.000000e+00 : f32
      %11 = vector.broadcast %cst : f32 to vector<128x128xf32>
      %c0 = arith.constant 0 : index
      %c0_3 = arith.constant 0 : index
      %12 = vector.load %arg11[%c0, %c0_3] : memref<128x128xf32, #tpu.memory_space<vmem>>, vector<128x128xf32>
      tpu.vector_store %arg11[%c0, %c0_3], %11 {strides = array<i32>} : memref<128x128xf32, #tpu.memory_space<vmem>>, vector<128x128xf32>,
      %c0_4 = arith.constant 0 : index
      %c0_5 = arith.constant 0 : index
      %13 = vector.load %arg6[%c0_4, %c0_5] : memref<128x128xbf16, #tpu.memory_space<vmem>>, vector<128x128xbf16>
      %c0_6 = arith.constant 0 : index
      %c0_7 = arith.constant 0 : index
      %14 = vector.load %arg7[%c0_6, %c0_7] : memref<128x128xbf16, #tpu.memory_space<vmem>>, vector<128x128xbf16>
      %cst_8 = arith.constant dense<0.000000e+00> : vector<128x128xf32>
      %15 = tpu.matmul %13, %14, %cst_8 {dimension_numbers = #tpu.dot_dimension_numbers<[1], [0], [0], [1], [0, 0, 1, 1], [], []>} : vector<128x128xbf16>, vector<128x128xbf16>, vector<128x128xf32> -> vector<128x128xf32>
      %c0_9 = arith.constant 0 : index
      %c0_10 = arith.constant 0 : index
      %16 = vector.load %arg9[%c0_9, %c0_10] : memref<1x128xf32, #tpu.memory_space<vmem>>, vector<1x128xf32>
      %17 = vector.broadcast %16 : vector<1x128xf32> to vector<128x128xf32>
      %18 = arith.addf %15, %17 : vector<128x128xf32>
      %c0_11 = arith.constant 0 : index
      %c0_12 = arith.constant 0 : index
      %19 = vector.load %arg12[%c0_11, %c0_12] : memref<128x128xf32, #tpu.memory_space<vmem>>, vector<128x128xf32>
      tpu.vector_store %arg12[%c0_11, %c0_12], %18 {strides = array<i32>} : memref<128x128xf32, #tpu.memory_space<vmem>>, vector<128x128xf32>,
    } else {
    }
    %3 = arith.index_cast %arg0 : i32 to index
    %4 = memref.load %arg3[%3] : memref<2xi32, #tpu.memory_space<smem>>
    %5 = arith.cmpi slt, %arg1, %4 : i32
    %6 = arith.extui %5 : i1 to i32
    %c0_i32_1 = arith.constant 0 : i32
    %7 = arith.cmpi ne, %6, %c0_i32_1 : i32
    scf.if %7 {
      %c0 = arith.constant 0 : index
      %c0_3 = arith.constant 0 : index
      %11 = vector.load %arg11[%c0, %c0_3] : memref<128x128xf32, #tpu.memory_space<vmem>>, vector<128x128xf32>
      %c0_4 = arith.constant 0 : index
      %c0_5 = arith.constant 0 : index
      %12 = vector.load %arg4[%c0_4, %c0_5] : memref<128x128xbf16, #tpu.memory_space<vmem>>, vector<128x128xbf16>
      %c0_6 = arith.constant 0 : index
      %c0_7 = arith.constant 0 : index
      %13 = vector.load %arg5[%c0_6, %c0_7] : memref<128x128xbf16, #tpu.memory_space<vmem>>, vector<128x128xbf16>
      %cst = arith.constant dense<0.000000e+00> : vector<128x128xf32>
      %14 = tpu.matmul %12, %13, %cst {dimension_numbers = #tpu.dot_dimension_numbers<[1], [0], [0], [1], [0, 0, 1, 1], [], []>} : vector<128x128xbf16>, vector<128x128xbf16>, vector<128x128xf32> -> vector<128x128xf32>
      %15 = arith.addf %11, %14 : vector<128x128xf32>
      %c0_8 = arith.constant 0 : index
      %c0_9 = arith.constant 0 : index
      %16 = vector.load %arg11[%c0_8, %c0_9] : memref<128x128xf32, #tpu.memory_space<vmem>>, vector<128x128xf32>
      tpu.vector_store %arg11[%c0_8, %c0_9], %15 {strides = array<i32>} : memref<128x128xf32, #tpu.memory_space<vmem>>, vector<128x128xf32>,
    } else {
    }
    %c1_i32 = arith.constant 1 : i32
    %8 = arith.cmpi eq, %arg1, %c1_i32 : i32
    %9 = arith.extui %8 : i1 to i32
    %c0_i32_2 = arith.constant 0 : i32
    %10 = arith.cmpi ne, %9, %c0_i32_2 : i32
    scf.if %10 {
      %c0 = arith.constant 0 : index
      %c0_3 = arith.constant 0 : index
      %11 = vector.load %arg12[%c0, %c0_3] : memref<128x128xf32, #tpu.memory_space<vmem>>, vector<128x128xf32>
      %c0_4 = arith.constant 0 : index
      %c0_5 = arith.constant 0 : index
      %12 = vector.load %arg11[%c0_4, %c0_5] : memref<128x128xf32, #tpu.memory_space<vmem>>, vector<128x128xf32>
      %13 = arith.truncf %12 : vector<128x128xf32> to vector<128x128xbf16>
      %c0_6 = arith.constant 0 : index
      %c0_7 = arith.constant 0 : index
      %14 = vector.load %arg8[%c0_6, %c0_7] : memref<128x128xbf16, #tpu.memory_space<vmem>>, vector<128x128xbf16>
      %cst = arith.constant dense<0.000000e+00> : vector<128x128xf32>
      %15 = tpu.matmul %13, %14, %cst {dimension_numbers = #tpu.dot_dimension_numbers<[1], [0], [0], [1], [0, 0, 1, 1], [], []>} : vector<128x128xbf16>, vector<128x128xbf16>, vector<128x128xf32> -> vector<128x128xf32>
      %16 = arith.addf %11, %15 : vector<128x128xf32>
      %cst_8 = arith.constant 0.000000e+00 : f32
      %17 = vector.broadcast %cst_8 : f32 to vector<128x128xf32>
      %18 = arith.maximumf %16, %17 : vector<128x128xf32>
      %19 = arith.truncf %18 : vector<128x128xf32> to vector<128x128xbf16>
      %c0_9 = arith.constant 0 : index
      %c0_10 = arith.constant 0 : index
      %20 = vector.load %arg10[%c0_9, %c0_10] : memref<128x128xbf16, #tpu.memory_space<vmem>>, vector<128x128xbf16>
      tpu.vector_store %arg10[%c0_9, %c0_10], %19 {strides = array<i32>} : memref<128x128xbf16, #tpu.memory_space<vmem>>, vector<128x128xbf16>,
    } else {
    }
    return
  }
  func.func @transform_0(%arg0: i32, %arg1: i32, %arg2: memref<4xi32, #tpu.memory_space<smem>>, %arg3: memref<2xi32, #tpu.memory_space<smem>>) -> (i32, i32) {
    %c2_i32 = arith.constant 2 : i32
    %0 = arith.muli %arg0, %c2_i32 : i32
    %1 = arith.addi %0, %arg1 : i32
    %2 = arith.index_cast %1 : i32 to index
    %3 = memref.load %arg2[%2] : memref<4xi32, #tpu.memory_space<smem>>
    %c0_i32 = arith.constant 0 : i32
    return %arg0, %3 : i32, i32
  }
  func.func @transform_1(%arg0: i32, %arg1: i32, %arg2: memref<4xi32, #tpu.memory_space<smem>>, %arg3: memref<2xi32, #tpu.memory_space<smem>>) -> (i32, i32) {
    %c2_i32 = arith.constant 2 : i32
    %0 = arith.muli %arg0, %c2_i32 : i32
    %1 = arith.addi %0, %arg1 : i32
    %2 = arith.index_cast %1 : i32 to index
    %3 = memref.load %arg2[%2] : memref<4xi32, #tpu.memory_space<smem>>
    %c0_i32 = arith.constant 0 : i32
    %c0_i32_0 = arith.constant 0 : i32
    return %3, %c0_i32 : i32, i32
  }
  func.func @transform_2(%arg0: i32, %arg1: i32, %arg2: memref<4xi32, #tpu.memory_space<smem>>, %arg3: memref<2xi32, #tpu.memory_space<smem>>) -> (i32, i32) {
    %c0_i32 = arith.constant 0 : i32
    %c0_i32_0 = arith.constant 0 : i32
    return %arg0, %c0_i32 : i32, i32
  }
  func.func @transform_3(%arg0: i32, %arg1: i32, %arg2: memref<4xi32, #tpu.memory_space<smem>>, %arg3: memref<2xi32, #tpu.memory_space<smem>>) -> (i32, i32) {
    %c0_i32 = arith.constant 0 : i32
    %c0_i32_0 = arith.constant 0 : i32
    %c0_i32_1 = arith.constant 0 : i32
    return %c0_i32, %c0_i32_0 : i32, i32
  }
  func.func @transform_4(%arg0: i32, %arg1: i32, %arg2: memref<4xi32, #tpu.memory_space<smem>>, %arg3: memref<2xi32, #tpu.memory_space<smem>>) -> (i32, i32) {
    %c0_i32 = arith.constant 0 : i32
    %c0_i32_0 = arith.constant 0 : i32
    %c0_i32_1 = arith.constant 0 : i32
    return %c0_i32, %c0_i32_0 : i32, i32
  }
  func.func @transform_5(%arg0: i32, %arg1: i32, %arg2: memref<4xi32, #tpu.memory_space<smem>>, %arg3: memref<2xi32, #tpu.memory_space<smem>>) -> (i32, i32) {
    %c0_i32 = arith.constant 0 : i32
    %c0_i32_0 = arith.constant 0 : i32
    %c0_i32_1 = arith.constant 0 : i32
    return %c0_i32, %c0_i32_0 : i32, i32
  }
  func.func @transform_6(%arg0: i32, %arg1: i32, %arg2: memref<4xi32, #tpu.memory_space<smem>>, %arg3: memref<2xi32, #tpu.memory_space<smem>>) -> (i32, i32) {
    %c0_i32 = arith.constant 0 : i32
    %c0_i32_0 = arith.constant 0 : i32
    return %arg0, %c0_i32 : i32, i32
  }
}

</mosaic_0001>

<llo_original>
// kernel: tpu_custom_call.1
$region0: #{tpu_custom_call.1}
  #allocation0 [shape = 'u32[]', space=smem, size = 0x4, offset = 0x4, fixed_abs, tag = 'smem constant byte address 0x4 - core index']
  #allocation1 [shape = 'u32[144,128]{1,0:T(1,128)}', space=vmem, size = 0x12000, scoped, tag = 'internal scratch']
  #allocation2 [shape = 'f32[128,128]{1,0:T(8,128)}', space=vmem, size = 0x10000, scoped, tag = 'scratch operand']
  #allocation3 [shape = 'f32[128,128]{1,0:T(8,128)}', space=vmem, size = 0x10000, scoped, tag = 'scratch operand']
  #allocation4 [shape = 's32[1]{0}', space=sflag, size = 0x4, scoped, tag = 'scoped memory for tpu_custom_call.1']
  #allocation5 [shape = 'u8[512]{0}', space=smem, size = 0x200, scoped, tag = 'prefetched SMEM operand 0']
  #allocation6 [shape = 'u8[512]{0}', space=smem, size = 0x200, scoped, tag = 'prefetched SMEM operand 1']
  %s0 = inlined_call_operand.hbm [shape: s32[4], index: 0, kind: input, shape index: {}]
  %s1 = inlined_call_operand.vmem [shape: s32[2], index: 1, kind: input, shape index: {}]
  %s2 = inlined_call_operand.hbm [shape: bf16[256,256], index: 2, kind: input, shape index: {}]
  %s3 = inlined_call_operand.hbm [shape: bf16[256,128], index: 3, kind: input, shape index: {}]
  %s4 = inlined_call_operand.hbm [shape: bf16[256,128], index: 4, kind: input, shape index: {}]
  %s5 = inlined_call_operand.hbm [shape: bf16[128,128], index: 5, kind: input, shape index: {}]
  %s6 = inlined_call_operand.hbm [shape: bf16[128,128], index: 6, kind: input, shape index: {}]
  %s7 = inlined_call_operand.vmem [shape: f32[1,128], index: 7, kind: input, shape index: {}]
  %s8 = inlined_call_operand.hbm [shape: bf16[256,128], index: 8, kind: output, shape index: {}]
  %s9 = sld [smem:[#allocation0]]
  $region89: #{tpu_custom_call.1} parent=0
    _
  %s11 = ssub.s32 1, %s9
  %s12 = scalar_select 0, %s11, %s9
  %14 = dma.hbm_to_smem %s0, 16, [#allocation5], [#allocation4]
  %s15 = sshll.u32 %s1, 4
  %s16 = int_to_ptr.vmem [resolvable:$true] %s15
  %18 = dma.vmem_to_smem %s16, 16, [#allocation6], [#allocation4]
  %19 = dma.done [#allocation4], 32
  %20 = sfence
  $region1: #{tpu_custom_call.1} parent=0
    #allocation7 [shape = 'u8[65536]{0}', space=vmem, size = 0x10000, scoped, tag = 'input window, operand 2']
    #allocation8 [shape = 's32[2]{0}', space=sflag, size = 0x8, scoped, tag = 'scoped memory for tpu_custom_call.1']
    #allocation9 [shape = 's32[2]{0}', space=sflag, size = 0x8, scoped, tag = 'scoped memory for tpu_custom_call.1']
    #allocation10 [shape = 'u8[65536]{0}', space=vmem, size = 0x10000, scoped, tag = 'input window, operand 3']
    #allocation11 [shape = 's32[2]{0}', space=sflag, size = 0x8, scoped, tag = 'scoped memory for tpu_custom_call.1']
    #allocation12 [shape = 'u8[65536]{0}', space=vmem, size = 0x10000, scoped, tag = 'input window, operand 4']
    #allocation13 [shape = 'u8[32768]{0}', space=vmem, size = 0x8000, scoped, tag = 'input window, operand 5, single buffered']
    #allocation14 [shape = 's32[1]{0}', space=sflag, size = 0x4, scoped, tag = 'scoped memory for tpu_custom_call.1']
    #allocation15 [shape = 'u8[32768]{0}', space=vmem, size = 0x8000, scoped, tag = 'input window, operand 6, single buffered']
    #allocation16 [shape = 'u8[65536]{0}', space=vmem, size = 0x10000, scoped, tag = 'output window, operand 0']
    %21 = vsyncpa [#allocation8], 0
    %s22 = scalar_lea.sflag [#allocation8], 1
    %23 = vsyncpa %s22, 0
    %24 = vsyncpa [#allocation11], 0
    %s25 = scalar_lea.sflag [#allocation11], 1
    %26 = vsyncpa %s25, 0
    %27 = vsyncpa [#allocation14], 0
    %28 = vsyncpa [#allocation9], 0
    %s29 = scalar_lea.sflag [#allocation9], 1
    %30 = vsyncpa %s29, 0
    loop: start=0, step=1, limit=6
    $region2: #{tpu_custom_call.1} parent=1 // loop_pre_header
      _
    $region3: #{tpu_custom_call.1} parent=1 // loop_header
      %s32 = sphi 0, %s36
      %p33 = scmp.ge.s32.totalorder %s32, 6
      %s39 = sphi 0, %s51
      %s40 = sphi 0, %s47
      %s41 = sphi 0, %s39
      %s42 = sphi 0, %s40
      %s43 = sphi 0, %s41
      %s44 = sphi 0, %s42
      %s62 = sphi 0, %s64
      %s65 = sphi 0, %s62
      %s66 = sphi 0, %s65
      %s82 = sphi 0, %s66
      %s94 = sphi 0, %s96
      %s97 = sphi 0, %s94
      %s98 = sphi 0, %s97
      %s114 = sphi 0, %s98
      %s120 = sphi 0, %s122
      %s123 = sphi 0, %s120
      %s124 = sphi 0, %s123
      %s140 = sphi 0, %s124
      %s144 = sphi 0, %s144
      %s146 = sphi 0, %s144
      %s147 = sphi 0, %s146
      %s161 = sphi 0, %s147
      %s165 = sphi 0, %s165
      %s167 = sphi 0, %s165
      %s168 = sphi 0, %s167
      %s182 = sphi 0, %s168
      %s186 = sphi 0, %s186
      %s188 = sphi 0, %s186
      %s189 = sphi 0, %s188
      %s203 = sphi 0, %s189
      %s209 = sphi 0, %s211
      %s212 = sphi 0, %s209
      %s213 = sphi 0, %s212
      %s229 = sphi 0, %s213
    $region4: #{tpu_custom_call.1} parent=1 // loop_header_branch
      %35 = sbr.rel (%p33) target = $region8
    $region5: #{tpu_custom_call.1} parent=1 // loop_body
      %s37 = ssub.s32 %s32, 1
      %s38 = ssub.s32 %s32, 2
      %s45 = sadd.s32 1, %s40
      %p46 = scmp.ge.s32.totalorder %s45, 2
      %s47 = scalar_select %p46, 0, %s45
      %s48 = sadd.s32 1, %s39
      %s49 = scalar_select %p46, %s48, %s39
      %p50 = scmp.ge.s32.totalorder %s49, 2
      %s51 = scalar_select %p50, 0, %s49
      %s52 = smul.u32 %s39, 2
      %s53 = sadd.s32 %s52, %s40
      %s54 = sld [smem:[#allocation5 + %s53]]
      %s55 = smul.u32 %s51, 2
      %s56 = sadd.s32 %s55, %s47
      %s57 = sld [smem:[#allocation5 + %s56]]
      %s58 = ssub.s32 %s39, %s51
      %s59 = ssub.s32 %s54, %s57
      %s60 = sor.u32 %s58, %s59
      %p61 = scmp.eq.s32.totalorder %s60, 0
      %s63 = sadd.s32 %s62, 1
      %s64 = scalar_select %p61, %s62, %s63
      %p67 = pneg %p61
      %p68 = scmp.eq.s32.totalorder %s32, 3
      %p69 = por %p67, %p68
      %p70 = scmp.ne.s32.totalorder %s62, %s65
      %p71 = scmp.eq.s32.totalorder %s32, 0
      %p72 = por %p70, %p71
      %p73 = scmp.ne.s32.totalorder %s62, %s65
      %p74 = scmp.eq.s32.totalorder %s37, 3
      %p75 = por %p73, %p74
      %p76 = scmp.ne.s32.totalorder %s65, %s66
      %p77 = scmp.eq.s32.totalorder %s37, 0
      %p78 = por %p76, %p77
      %p79 = scmp.ne.s32.totalorder %s65, %s66
      %p80 = scmp.eq.s32.totalorder %s38, 3
      %p81 = por %p79, %p80
      %p83 = scmp.ne.s32.totalorder %s66, %s82
      %p84 = scmp.eq.s32.totalorder %s38, 0
      %p85 = por %p83, %p84
      %s86 = smul.u32 %s39, 2
      %s87 = sadd.s32 %s86, %s40
      %s88 = sld [smem:[#allocation5 + %s87]]
      %s89 = smul.u32 %s51, 2
      %s90 = sadd.s32 %s89, %s47
      %s91 = sld [smem:[#allocation5 + %s90]]
      %s92 = ssub.s32 %s88, %s91
      %p93 = scmp.eq.s32.totalorder %s92, 0
      %s95 = sadd.s32 %s94, 1
      %s96 = scalar_select %p93, %s94, %s95
      %p99 = pneg %p93
      %p100 = scmp.eq.s32.totalorder %s32, 3
      %p101 = por %p99, %p100
      %p102 = scmp.ne.s32.totalorder %s94, %s97
      %p103 = scmp.eq.s32.totalorder %s32, 0
      %p104 = por %p102, %p103
      %p105 = scmp.ne.s32.totalorder %s94, %s97
      %p106 = scmp.eq.s32.totalorder %s37, 3
      %p107 = por %p105, %p106
      %p108 = scmp.ne.s32.totalorder %s97, %s98
      %p109 = scmp.eq.s32.totalorder %s37, 0
      %p110 = por %p108, %p109
      %p111 = scmp.ne.s32.totalorder %s97, %s98
      %p112 = scmp.eq.s32.totalorder %s38, 3
      %p113 = por %p111, %p112
      %p115 = scmp.ne.s32.totalorder %s98, %s114
      %p116 = scmp.eq.s32.totalorder %s38, 0
      %p117 = por %p115, %p116
      %s118 = ssub.s32 %s39, %s51
      %p119 = scmp.eq.s32.totalorder %s118, 0
      %s121 = sadd.s32 %s120, 1
      %s122 = scalar_select %p119, %s120, %s121
      %p125 = pneg %p119
      %p126 = scmp.eq.s32.totalorder %s32, 3
      %p127 = por %p125, %p126
      %p128 = scmp.ne.s32.totalorder %s120, %s123
      %p129 = scmp.eq.s32.totalorder %s32, 0
      %p130 = por %p128, %p129
      %p131 = scmp.ne.s32.totalorder %s120, %s123
      %p132 = scmp.eq.s32.totalorder %s37, 3
      %p133 = por %p131, %p132
      %p134 = scmp.ne.s32.totalorder %s123, %s124
      %p135 = scmp.eq.s32.totalorder %s37, 0
      %p136 = por %p134, %p135
      %p137 = scmp.ne.s32.totalorder %s123, %s124
      %p138 = scmp.eq.s32.totalorder %s38, 3
      %p139 = por %p137, %p138
      %p141 = scmp.ne.s32.totalorder %s124, %s140
      %p142 = scmp.eq.s32.totalorder %s38, 0
      %p143 = por %p141, %p142
      %s145 = sadd.s32 %s144, 1
      %p148 = scmp.eq.s32.totalorder %s32, 3
      %p149 = scmp.ne.s32.totalorder %s144, %s146
      %p150 = scmp.eq.s32.totalorder %s32, 0
      %p151 = por %p149, %p150
      %p152 = scmp.ne.s32.totalorder %s144, %s146
      %p153 = scmp.eq.s32.totalorder %s37, 3
      %p154 = por %p152, %p153
      %p155 = scmp.ne.s32.totalorder %s146, %s147
      %p156 = scmp.eq.s32.totalorder %s37, 0
      %p157 = por %p155, %p156
      %p158 = scmp.ne.s32.totalorder %s146, %s147
      %p159 = scmp.eq.s32.totalorder %s38, 3
      %p160 = por %p158, %p159
      %p162 = scmp.ne.s32.totalorder %s147, %s161
      %p163 = scmp.eq.s32.totalorder %s38, 0
      %p164 = por %p162, %p163
      %s166 = sadd.s32 %s165, 1
      %p169 = scmp.eq.s32.totalorder %s32, 3
      %p170 = scmp.ne.s32.totalorder %s165, %s167
      %p171 = scmp.eq.s32.totalorder %s32, 0
      %p172 = por %p170, %p171
      %p173 = scmp.ne.s32.totalorder %s165, %s167
      %p174 = scmp.eq.s32.totalorder %s37, 3
      %p175 = por %p173, %p174
      %p176 = scmp.ne.s32.totalorder %s167, %s168
      %p177 = scmp.eq.s32.totalorder %s37, 0
      %p178 = por %p176, %p177
      %p179 = scmp.ne.s32.totalorder %s167, %s168
      %p180 = scmp.eq.s32.totalorder %s38, 3
      %p181 = por %p179, %p180
      %p183 = scmp.ne.s32.totalorder %s168, %s182
      %p184 = scmp.eq.s32.totalorder %s38, 0
      %p185 = por %p183, %p184
      %s187 = sadd.s32 %s186, 1
      %p190 = scmp.eq.s32.totalorder %s32, 3
      %p191 = scmp.ne.s32.totalorder %s186, %s188
      %p192 = scmp.eq.s32.totalorder %s32, 0
      %p193 = por %p191, %p192
      %p194 = scmp.ne.s32.totalorder %s186, %s188
      %p195 = scmp.eq.s32.totalorder %s37, 3
      %p196 = por %p194, %p195
      %p197 = scmp.ne.s32.totalorder %s188, %s189
      %p198 = scmp.eq.s32.totalorder %s37, 0
      %p199 = por %p197, %p198
      %p200 = scmp.ne.s32.totalorder %s188, %s189
      %p201 = scmp.eq.s32.totalorder %s38, 3
      %p202 = por %p200, %p201
      %p204 = scmp.ne.s32.totalorder %s189, %s203
      %p205 = scmp.eq.s32.totalorder %s38, 0
      %p206 = por %p204, %p205
      %s207 = ssub.s32 %s39, %s51
      %p208 = scmp.eq.s32.totalorder %s207, 0
      %s210 = sadd.s32 %s209, 1
      %s211 = scalar_select %p208, %s209, %s210
      %p214 = pneg %p208
      %p215 = scmp.eq.s32.totalorder %s32, 3
      %p216 = por %p214, %p215
      %p217 = scmp.ne.s32.totalorder %s209, %s212
      %p218 = scmp.eq.s32.totalorder %s32, 0
      %p219 = por %p217, %p218
      %p220 = scmp.ne.s32.totalorder %s209, %s212
      %p221 = scmp.eq.s32.totalorder %s37, 3
      %p222 = por %p220, %p221
      %p223 = scmp.ne.s32.totalorder %s212, %s213
      %p224 = scmp.eq.s32.totalorder %s37, 0
      %p225 = por %p223, %p224
      %p226 = scmp.ne.s32.totalorder %s212, %s213
      %p227 = scmp.eq.s32.totalorder %s38, 3
      %p228 = por %p226, %p227
      %p230 = scmp.ne.s32.totalorder %s213, %s229
      %p231 = scmp.eq.s32.totalorder %s38, 0
      %p232 = por %p230, %p231
      %p233 = scmp.le.s32.totalorder 1, %s32
      %p234 = scmp.lt.s32.totalorder %s32, 5
      %p235 = pnand %p233, %p234
      %p236 = pneg %p235
      // Predicated region
      $region9: #{tpu_custom_call.1} parent=5 // pred_check
        _
      $region10: #{tpu_custom_call.1} parent=5 // pred_check_branch
        %238 = sbr.rel (%p235) target = $region12
      $region11: #{tpu_custom_call.1} parent=5 // pred_region
        %s239 = ssub.s32 %s32, 1
        // Predicated region
        $region13: #{tpu_custom_call.1} parent=11 // pred_check
          %p240 = pneg %p157
        $region14: #{tpu_custom_call.1} parent=11 // pred_check_branch
          %242 = sbr.rel (%p240) target = $region16
        $region15: #{tpu_custom_call.1} parent=11 // pred_region
          %s244 = ssub.s32 1024, 1024
          %245 = vsyncadd [#allocation14], %s244
          %s246 = sshll.u32 [#allocation13], 4
          %s247 = int_to_ptr.vmem [resolvable:$true] %s246
          %252 = dma.hbm_to_vmem [thread:$0]  %s5, 1024, %s247, [#allocation14], 64, 64, 4
        $region16: #{tpu_custom_call.1} parent=11 // pred_fallthru
          _
        // Predicated region
        $region17: #{tpu_custom_call.1} parent=11 // pred_check
          %p253 = pneg %p178
        $region18: #{tpu_custom_call.1} parent=11 // pred_check_branch
          %255 = sbr.rel (%p253) target = $region20
        $region19: #{tpu_custom_call.1} parent=11 // pred_region
          %s257 = ssub.s32 1024, 1024
          %258 = vsyncadd [#allocation14], %s257
          %s259 = sshll.u32 [#allocation15], 4
          %s260 = int_to_ptr.vmem [resolvable:$true] %s259
          %265 = dma.hbm_to_vmem [thread:$0]  %s6, 1024, %s260, [#allocation14], 64, 64, 4
        $region20: #{tpu_custom_call.1} parent=11 // pred_fallthru
          _
        // Predicated region
        $region21: #{tpu_custom_call.1} parent=11 // pred_check
          %p266 = pneg %p199
        $region22: #{tpu_custom_call.1} parent=11 // pred_check_branch
          %268 = sbr.rel (%p266) target = $region24
        $region23: #{tpu_custom_call.1} parent=11 // pred_region
          _
        $region24: #{tpu_custom_call.1} parent=11 // pred_fallthru
          _
      $region12: #{tpu_custom_call.1} parent=5 // pred_fallthru
        _
      %p269 = scmp.lt.s32.totalorder %s32, 4
      // Predicated region
      $region25: #{tpu_custom_call.1} parent=5 // pred_check
        %p270 = pneg %p269
      $region26: #{tpu_custom_call.1} parent=5 // pred_check_branch
        %272 = sbr.rel (%p270) target = $region28
      $region27: #{tpu_custom_call.1} parent=5 // pred_region
        // Predicated region
        $region29: #{tpu_custom_call.1} parent=27 // pred_check
          %p273 = pneg %p72
        $region30: #{tpu_custom_call.1} parent=27 // pred_check_branch
          %275 = sbr.rel (%p273) target = $region32
        $region31: #{tpu_custom_call.1} parent=27 // pred_region
          %s276 = sand.u32 %s62, 1
          %s277 = scalar_lea.sflag [#allocation8], %s276
          %s278 = sand.u32 %s62, 1
          %s279 = smul.addr %s278, 64
          %s280 = scalar_lea.vmem [#allocation7], %s279
          %s281 = smul.u32 %s39, 2
          %s282 = sadd.s32 %s281, %s40
          %s283 = sld [smem:[#allocation5 + %s282]]
          %s284 = smul.u32 16, %s39
          %s286 = ssub.s32 1024, 1024
          %287 = vsyncadd %s277, %s286
          %s288 = smul.addr %s284, 2
          %s289 = sadd.s32 %s283, %s288
          %s290 = smul.addr %s289, 64
          %s291 = scalar_lea.hbm %s2, %s290
          %s292 = sshll.u32 %s280, 4
          %s293 = int_to_ptr.vmem [resolvable:$true] %s292
          %298 = dma.hbm_to_vmem [thread:$0]  %s291, 1024, %s293, %s277, 128, 64, 4
        $region32: #{tpu_custom_call.1} parent=27 // pred_fallthru
          _
        // Predicated region
        $region33: #{tpu_custom_call.1} parent=27 // pred_check
          %p299 = pneg %p104
        $region34: #{tpu_custom_call.1} parent=27 // pred_check_branch
          %301 = sbr.rel (%p299) target = $region36
        $region35: #{tpu_custom_call.1} parent=27 // pred_region
          %s302 = sand.u32 %s32, 1
          %s303 = scalar_lea.sflag [#allocation11], %s302
          %s304 = sand.u32 %s94, 1
          %s305 = smul.addr %s304, 64
          %s306 = scalar_lea.vmem [#allocation10], %s305
          %s307 = smul.u32 %s39, 2
          %s308 = sadd.s32 %s307, %s40
          %s309 = sld [smem:[#allocation5 + %s308]]
          %s310 = smul.u32 16, %s309
          %s312 = ssub.s32 1024, 1024
          %313 = vsyncadd %s303, %s312
          %s314 = smul.addr %s310, 64
          %s315 = scalar_lea.hbm %s3, %s314
          %s316 = sshll.u32 %s306, 4
          %s317 = int_to_ptr.vmem [resolvable:$true] %s316
          %322 = dma.hbm_to_vmem [thread:$0]  %s315, 1024, %s317, %s303, 64, 64, 4
        $region36: #{tpu_custom_call.1} parent=27 // pred_fallthru
          _
        // Predicated region
        $region37: #{tpu_custom_call.1} parent=27 // pred_check
          %p323 = pneg %p130
        $region38: #{tpu_custom_call.1} parent=27 // pred_check_branch
          %325 = sbr.rel (%p323) target = $region40
        $region39: #{tpu_custom_call.1} parent=27 // pred_region
          %s326 = sand.u32 %s32, 1
          %s327 = scalar_lea.sflag [#allocation11], %s326
          %s328 = sand.u32 %s120, 1
          %s329 = smul.addr %s328, 64
          %s330 = scalar_lea.vmem [#allocation12], %s329
          %s331 = smul.u32 16, %s39
          %s333 = ssub.s32 1024, 1024
          %334 = vsyncadd %s327, %s333
          %s335 = smul.addr %s331, 64
          %s336 = scalar_lea.hbm %s4, %s335
          %s337 = sshll.u32 %s330, 4
          %s338 = int_to_ptr.vmem [resolvable:$true] %s337
          %343 = dma.hbm_to_vmem [thread:$0]  %s336, 1024, %s338, %s327, 64, 64, 4
        $region40: #{tpu_custom_call.1} parent=27 // pred_fallthru
          _
      $region28: #{tpu_custom_call.1} parent=5 // pred_fallthru
        _
      %p344 = scmp.le.s32.totalorder 1, %s32
      %p345 = scmp.lt.s32.totalorder %s32, 5
      %p346 = pnand %p344, %p345
      %p347 = pneg %p346
      // Predicated region
      $region41: #{tpu_custom_call.1} parent=5 // pred_check
        _
      $region42: #{tpu_custom_call.1} parent=5 // pred_check_branch
        %349 = sbr.rel (%p346) target = $region44
      $region43: #{tpu_custom_call.1} parent=5 // pred_region
        %s350 = ssub.s32 %s32, 1
        %s351 = sand.u32 %s65, 1
        %s352 = scalar_lea.sflag [#allocation8], %s351
        %s353 = sand.u32 %s65, 1
        %s354 = smul.addr %s353, 64
        %s355 = scalar_lea.vmem [#allocation7], %s354
        // Predicated region
        $region45: #{tpu_custom_call.1} parent=43 // pred_check
          %p356 = pneg %p78
        $region46: #{tpu_custom_call.1} parent=43 // pred_check_branch
          %358 = sbr.rel (%p356) target = $region48
        $region47: #{tpu_custom_call.1} parent=43 // pred_region
          %359 = dma.done %s352, 1024
        $region48: #{tpu_custom_call.1} parent=43 // pred_fallthru
          _
        %s360 = sand.u32 %s37, 1
        %s361 = scalar_lea.sflag [#allocation11], %s360
        %s362 = sand.u32 %s97, 1
        %s363 = smul.addr %s362, 64
        %s364 = scalar_lea.vmem [#allocation10], %s363
        // Predicated region
        $region49: #{tpu_custom_call.1} parent=43 // pred_check
          %p365 = pneg %p110
        $region50: #{tpu_custom_call.1} parent=43 // pred_check_branch
          %367 = sbr.rel (%p365) target = $region52
        $region51: #{tpu_custom_call.1} parent=43 // pred_region
          %368 = dma.done %s361, 1024
        $region52: #{tpu_custom_call.1} parent=43 // pred_fallthru
          _
        %s369 = sand.u32 %s37, 1
        %s370 = scalar_lea.sflag [#allocation11], %s369
        %s371 = sand.u32 %s123, 1
        %s372 = smul.addr %s371, 64
        %s373 = scalar_lea.vmem [#allocation12], %s372
        // Predicated region
        $region53: #{tpu_custom_call.1} parent=43 // pred_check
          %p374 = pneg %p136
        $region54: #{tpu_custom_call.1} parent=43 // pred_check_branch
          %376 = sbr.rel (%p374) target = $region56
        $region55: #{tpu_custom_call.1} parent=43 // pred_region
          %377 = dma.done %s370, 1024
        $region56: #{tpu_custom_call.1} parent=43 // pred_fallthru
          _
        // Predicated region
        $region57: #{tpu_custom_call.1} parent=43 // pred_check
          %p378 = pneg %p157
        $region58: #{tpu_custom_call.1} parent=43 // pred_check_branch
          %380 = sbr.rel (%p378) target = $region60
        $region59: #{tpu_custom_call.1} parent=43 // pred_region
          %381 = dma.done [#allocation14], 1024
        $region60: #{tpu_custom_call.1} parent=43 // pred_fallthru
          _
        // Predicated region
        $region61: #{tpu_custom_call.1} parent=43 // pred_check
          %p382 = pneg %p178
        $region62: #{tpu_custom_call.1} parent=43 // pred_check_branch
          %384 = sbr.rel (%p382) target = $region64
        $region63: #{tpu_custom_call.1} parent=43 // pred_region
          %385 = dma.done [#allocation14], 1024
        $region64: #{tpu_custom_call.1} parent=43 // pred_fallthru
          _
        %s386 = sand.u32 %s65, 1
        %s387 = scalar_lea.sflag [#allocation8], %s386
        %s388 = sand.u32 %s65, 1
        %s389 = smul.addr %s388, 64
        %s390 = scalar_lea.vmem [#allocation7], %s389
        %p391 = pneg %p78
        %p392 = pneg %p75
        %s393 = sand.u32 %s37, 1
        %s394 = scalar_lea.sflag [#allocation11], %s393
        %s395 = sand.u32 %s97, 1
        %s396 = smul.addr %s395, 64
        %s397 = scalar_lea.vmem [#allocation10], %s396
        %p398 = pneg %p110
        %p399 = pneg %p107
        %s400 = sand.u32 %s37, 1
        %s401 = scalar_lea.sflag [#allocation11], %s400
        %s402 = sand.u32 %s123, 1
        %s403 = smul.addr %s402, 64
        %s404 = scalar_lea.vmem [#allocation12], %s403
        %p405 = pneg %p136
        %p406 = pneg %p133
        %p407 = pneg %p157
        %p408 = pneg %p154
        %p409 = pneg %p178
        %p410 = pneg %p175
        %p411 = pneg %p199
        %p412 = pneg %p196
        %p413 = pneg %p225
        %p414 = pneg %p222
        %s415 = sand.u32 %s212, 1
        %s416 = scalar_lea.sflag [#allocation9], %s415
        %s417 = sand.u32 %s212, 1
        %s418 = smul.addr %s417, 64
        %s419 = scalar_lea.vmem [#allocation16], %s418
        %s420 = smul.u32 %s41, 2
        %s421 = sadd.s32 %s420, %s42
        %s422 = sld [smem:[#allocation5 + %s421]]
        %s423 = smul.u32 16, %s41
        %s424 = smul.u32 %s41, 2
        %s425 = sadd.s32 %s424, %s42
        %s426 = sld [smem:[#allocation5 + %s425]]
        %s427 = smul.u32 16, %s426
        %s428 = smul.u32 16, %s41
        %s429 = smul.u32 16, %s41
        %p431 = scmp.eq.s32.totalorder %s42, 0
        // Predicated region
        $region65: #{tpu_custom_call.1} parent=43 // pred_check
          %p432 = pneg %p431
        $region66: #{tpu_custom_call.1} parent=43 // pred_check_branch
          %434 = sbr.rel (%p432) target = $region68
        $region67: #{tpu_custom_call.1} parent=43 // pred_region
          %435 = vst [vmem:[#allocation2] sm:$0xff] 0.0
          %436 = vst [vmem:[#allocation2 + $0x8] sm:$0xff] 0.0
          %437 = vst [vmem:[#allocation2 + $0x10] sm:$0xff] 0.0
          %438 = vst [vmem:[#allocation2 + $0x18] sm:$0xff] 0.0
          %439 = vst [vmem:[#allocation2 + $0x20] sm:$0xff] 0.0
          %440 = vst [vmem:[#allocation2 + $0x28] sm:$0xff] 0.0
          %441 = vst [vmem:[#allocation2 + $0x30] sm:$0xff] 0.0
          %442 = vst [vmem:[#allocation2 + $0x38] sm:$0xff] 0.0
          %443 = vst [vmem:[#allocation2 + $0x40] sm:$0xff] 0.0
          %444 = vst [vmem:[#allocation2 + $0x48] sm:$0xff] 0.0
          %445 = vst [vmem:[#allocation2 + $0x50] sm:$0xff] 0.0
          %446 = vst [vmem:[#allocation2 + $0x58] sm:$0xff] 0.0
          %447 = vst [vmem:[#allocation2 + $0x60] sm:$0xff] 0.0
          %448 = vst [vmem:[#allocation2 + $0x68] sm:$0xff] 0.0
          %449 = vst [vmem:[#allocation2 + $0x70] sm:$0xff] 0.0
          %450 = vst [vmem:[#allocation2 + $0x78] sm:$0xff] 0.0
          %v451 = vld [vmem:[%s373] sm:$0xf]
          %v452 = vld [vmem:[%s373 + $0x4] sm:$0xf]
          %v453 = vld [vmem:[%s373 + $0x8] sm:$0xf]
          %v454 = vld [vmem:[%s373 + $0xc] sm:$0xf]
          %v455 = vld [vmem:[%s373 + $0x10] sm:$0xf]
          %v456 = vld [vmem:[%s373 + $0x14] sm:$0xf]
          %v457 = vld [vmem:[%s373 + $0x18] sm:$0xf]
          %v458 = vld [vmem:[%s373 + $0x1c] sm:$0xf]
          %v459 = vld [vmem:[%s373 + $0x20] sm:$0xf]
          %v460 = vld [vmem:[%s373 + $0x24] sm:$0xf]
          %v461 = vld [vmem:[%s373 + $0x28] sm:$0xf]
          %v462 = vld [vmem:[%s373 + $0x2c] sm:$0xf]
          %v463 = vld [vmem:[%s373 + $0x30] sm:$0xf]
          %v464 = vld [vmem:[%s373 + $0x34] sm:$0xf]
          %v465 = vld [vmem:[%s373 + $0x38] sm:$0xf]
          %v466 = vld [vmem:[%s373 + $0x3c] sm:$0xf]
          %v467 = vld [vmem:[#allocation13] sm:$0xf]
          %v468 = vld [vmem:[#allocation13 + $0x4] sm:$0xf]
          %v469 = vld [vmem:[#allocation13 + $0x8] sm:$0xf]
          %v470 = vld [vmem:[#allocation13 + $0xc] sm:$0xf]
          %v471 = vld [vmem:[#allocation13 + $0x10] sm:$0xf]
          %v472 = vld [vmem:[#allocation13 + $0x14] sm:$0xf]
          %v473 = vld [vmem:[#allocation13 + $0x18] sm:$0xf]
          %v474 = vld [vmem:[#allocation13 + $0x1c] sm:$0xf]
          %v475 = vld [vmem:[#allocation13 + $0x20] sm:$0xf]
          %v476 = vld [vmem:[#allocation13 + $0x24] sm:$0xf]
          %v477 = vld [vmem:[#allocation13 + $0x28] sm:$0xf]
          %v478 = vld [vmem:[#allocation13 + $0x2c] sm:$0xf]
          %v479 = vld [vmem:[#allocation13 + $0x30] sm:$0xf]
          %v480 = vld [vmem:[#allocation13 + $0x34] sm:$0xf]
          %v481 = vld [vmem:[#allocation13 + $0x38] sm:$0xf]
          %v482 = vld [vmem:[#allocation13 + $0x3c] sm:$0xf]
          %v483 = vld [vmem:[%s7] sm:$0x1]
          %v485 = vlaneseq
          %v486 = vshrl.u32 %v485, 7
          %v487 = vsub.s32 0, %v486
          %v488 = vrot.slane %v483, %v487
          %v506 = vunpack.c.l.b16 %v451
          %v507 = vunpack.c.l.b16 %v452
          %v508 = vunpack.c.l.b16 %v453
          %v509 = vunpack.c.l.b16 %v454
          %v510 = vunpack.c.l.b16 %v455
          %v511 = vunpack.c.l.b16 %v456
          %v512 = vunpack.c.l.b16 %v457
          %v513 = vunpack.c.l.b16 %v458
          %v514 = vunpack.c.l.b16 %v459
          %v515 = vunpack.c.l.b16 %v460
          %v516 = vunpack.c.l.b16 %v461
          %v517 = vunpack.c.l.b16 %v462
          %v518 = vunpack.c.l.b16 %v463
          %v519 = vunpack.c.l.b16 %v464
          %v520 = vunpack.c.l.b16 %v465
          %v521 = vunpack.c.l.b16 %v466
          %v522 = vpack.c.b16 %v507, %v506
          %v523 = vpack.c.b16 %v509, %v508
          %v524 = vpack.c.b16 %v511, %v510
          %v525 = vpack.c.b16 %v513, %v512
          %v526 = vpack.c.b16 %v515, %v514
          %v527 = vpack.c.b16 %v517, %v516
          %v528 = vpack.c.b16 %v519, %v518
          %v529 = vpack.c.b16 %v521, %v520
          %v554 = vunpack.c.l.b16 %v467
          %v555 = vunpack.c.l.b16 %v468
          %v556 = vunpack.c.l.b16 %v469
          %v557 = vunpack.c.l.b16 %v470
          %v558 = vunpack.c.l.b16 %v471
          %v559 = vunpack.c.l.b16 %v472
          %v560 = vunpack.c.l.b16 %v473
          %v561 = vunpack.c.l.b16 %v474
          %v562 = vunpack.c.l.b16 %v475
          %v563 = vunpack.c.l.b16 %v476
          %v564 = vunpack.c.l.b16 %v477
          %v565 = vunpack.c.l.b16 %v478
          %v566 = vunpack.c.l.b16 %v479
          %v567 = vunpack.c.l.b16 %v480
          %v568 = vunpack.c.l.b16 %v481
          %v569 = vunpack.c.l.b16 %v482
          %v570 = vpack.c.b16 %v555, %v554
          %v571 = vpack.c.b16 %v557, %v556
          %v572 = vpack.c.b16 %v559, %v558
          %v573 = vpack.c.b16 %v561, %v560
          %v574 = vpack.c.b16 %v563, %v562
          %v575 = vpack.c.b16 %v565, %v564
          %v576 = vpack.c.b16 %v567, %v566
          %v577 = vpack.c.b16 %v569, %v568
          %586 = vmatprep.subr.bf16.mxu0 0
          %587 = vmatpush1.bf16.msra.mxu0 %v570
          %588 = vmatprep.subr.bf16.mxu0 0
          %589 = vmatpush1.bf16.msra.mxu0 %v571
          %590 = vmatprep.subr.bf16.mxu0 0
          %591 = vmatpush1.bf16.msra.mxu0 %v572
          %592 = vmatprep.subr.bf16.mxu0 0
          %593 = vmatpush1.bf16.msra.mxu0 %v573
          %594 = vmatprep.subr.bf16.mxu0 0
          %595 = vmatpush1.bf16.msra.mxu0 %v574
          %596 = vmatprep.subr.bf16.mxu0 0
          %597 = vmatpush1.bf16.msra.mxu0 %v575
          %598 = vmatprep.subr.bf16.mxu0 0
          %599 = vmatpush1.bf16.msra.mxu0 %v576
          %600 = vmatprep.subr.bf16.mxu0 0
          %601 = vmatpush1.bf16.msra.mxu0 %v577
          %602 = vmatprep.subr.bf16.mxu0 0
          %603 = vmatpush1.bf16.msra.mxu0 0
          %604 = vmatprep.subr.bf16.mxu0 0
          %605 = vmatpush1.bf16.msra.mxu0 0
          %606 = vmatprep.subr.bf16.mxu0 0
          %607 = vmatpush1.bf16.msra.mxu0 0
          %608 = vmatprep.subr.bf16.mxu0 0
          %609 = vmatpush1.bf16.msra.mxu0 0
          %610 = vmatprep.subr.bf16.mxu0 0
          %611 = vmatpush1.bf16.msra.mxu0 0
          %612 = vmatprep.subr.bf16.mxu0 0
          %613 = vmatpush1.bf16.msra.mxu0 0
          %614 = vmatprep.subr.bf16.mxu0 0
          %615 = vmatpush1.bf16.msra.mxu0 0
          %616 = vmatprep.subr.bf16.mxu0 0
          %617 = vmatpush1.bf16.msra.mxu0 0
          %618 = vmatprep.mubr.bf16.mxu0 0
          %619 = vmatmul.mubr.bf16.gmra.mrb[0].mxu0 %v522
          %v620 = vpop.f32.mrb[0].mxu0
          %v621 = vadd.f32 %v488, %v620
          %v622 = vpop.f32.mrb[0].mxu0
          %v623 = vpop.f32.mrb[0].mxu0
          %v624 = vadd.f32 %v488, %v623
          %v625 = vpop.f32.mrb[0].mxu0
          %626 = vmatprep.mubr.bf16.mxu0 0
          %627 = vmatmul.mubr.bf16.gmra.mrb[0].mxu0 %v523
          %v628 = vpop.f32.mrb[0].mxu0
          %v629 = vadd.f32 %v488, %v628
          %v630 = vpop.f32.mrb[0].mxu0
          %v631 = vpop.f32.mrb[0].mxu0
          %v632 = vadd.f32 %v488, %v631
          %v633 = vpop.f32.mrb[0].mxu0
          %634 = vmatprep.mubr.bf16.mxu0 0
          %635 = vmatmul.mubr.bf16.gmra.mrb[0].mxu0 %v524
          %v636 = vpop.f32.mrb[0].mxu0
          %v637 = vadd.f32 %v488, %v636
          %v638 = vpop.f32.mrb[0].mxu0
          %v639 = vpop.f32.mrb[0].mxu0
          %v640 = vadd.f32 %v488, %v639
          %v641 = vpop.f32.mrb[0].mxu0
          %642 = vmatprep.mubr.bf16.mxu0 0
          %643 = vmatmul.mubr.bf16.gmra.mrb[0].mxu0 %v525
          %v644 = vpop.f32.mrb[0].mxu0
          %v645 = vadd.f32 %v488, %v644
          %v646 = vpop.f32.mrb[0].mxu0
          %v647 = vpop.f32.mrb[0].mxu0
          %v648 = vadd.f32 %v488, %v647
          %v649 = vpop.f32.mrb[0].mxu0
          %650 = vmatprep.mubr.bf16.mxu0 0
          %651 = vmatmul.mubr.bf16.gmra.mrb[0].mxu0 %v526
          %v652 = vpop.f32.mrb[0].mxu0
          %v653 = vadd.f32 %v488, %v652
          %v654 = vpop.f32.mrb[0].mxu0
          %v655 = vpop.f32.mrb[0].mxu0
          %v656 = vadd.f32 %v488, %v655
          %v657 = vpop.f32.mrb[0].mxu0
          %658 = vmatprep.mubr.bf16.mxu0 0
          %659 = vmatmul.mubr.bf16.gmra.mrb[0].mxu0 %v527
          %v660 = vpop.f32.mrb[0].mxu0
          %v661 = vadd.f32 %v488, %v660
          %v662 = vpop.f32.mrb[0].mxu0
          %v663 = vpop.f32.mrb[0].mxu0
          %v664 = vadd.f32 %v488, %v663
          %v665 = vpop.f32.mrb[0].mxu0
          %666 = vmatprep.mubr.bf16.mxu0 0
          %667 = vmatmul.mubr.bf16.gmra.mrb[0].mxu0 %v528
          %v668 = vpop.f32.mrb[0].mxu0
          %v669 = vadd.f32 %v488, %v668
          %v670 = vpop.f32.mrb[0].mxu0
          %v671 = vpop.f32.mrb[0].mxu0
          %v672 = vadd.f32 %v488, %v671
          %v673 = vpop.f32.mrb[0].mxu0
          %674 = vmatprep.mubr.bf16.mxu0 0
          %675 = vmatmul.mubr.bf16.gmra.mrb[0].mxu0 %v529
          %v676 = vpop.f32.mrb[0].mxu0
          %v677 = vadd.f32 %v488, %v676
          %v678 = vpop.f32.mrb[0].mxu0
          %v679 = vpop.f32.mrb[0].mxu0
          %v680 = vadd.f32 %v488, %v679
          %v681 = vpop.f32.mrb[0].mxu0
          %682 = vdwg.mxu0
          %683 = vst [vmem:[#allocation3] sm:$0xff] %v621
          %684 = vst [vmem:[#allocation3 + $0x8] sm:$0xff] %v624
          %685 = vst [vmem:[#allocation3 + $0x10] sm:$0xff] %v629
          %686 = vst [vmem:[#allocation3 + $0x18] sm:$0xff] %v632
          %687 = vst [vmem:[#allocation3 + $0x20] sm:$0xff] %v637
          %688 = vst [vmem:[#allocation3 + $0x28] sm:$0xff] %v640
          %689 = vst [vmem:[#allocation3 + $0x30] sm:$0xff] %v645
          %690 = vst [vmem:[#allocation3 + $0x38] sm:$0xff] %v648
          %691 = vst [vmem:[#allocation3 + $0x40] sm:$0xff] %v653
          %692 = vst [vmem:[#allocation3 + $0x48] sm:$0xff] %v656
          %693 = vst [vmem:[#allocation3 + $0x50] sm:$0xff] %v661
          %694 = vst [vmem:[#allocation3 + $0x58] sm:$0xff] %v664
          %695 = vst [vmem:[#allocation3 + $0x60] sm:$0xff] %v669
          %696 = vst [vmem:[#allocation3 + $0x68] sm:$0xff] %v672
          %697 = vst [vmem:[#allocation3 + $0x70] sm:$0xff] %v677
          %698 = vst [vmem:[#allocation3 + $0x78] sm:$0xff] %v680
        $region68: #{tpu_custom_call.1} parent=43 // pred_fallthru
          _
        %s699 = sld [smem:[#allocation6 + %s41]]
        %p700 = scmp.lt.s32.totalorder %s42, %s699
        // Predicated region
        $region69: #{tpu_custom_call.1} parent=43 // pred_check
          %p701 = pneg %p700
        $region70: #{tpu_custom_call.1} parent=43 // pred_check_branch
          %703 = sbr.rel (%p701) target = $region72
        $region71: #{tpu_custom_call.1} parent=43 // pred_region
          %v704 = vld [vmem:[#allocation2] sm:$0xff]
          %v705 = vld [vmem:[#allocation2 + $0x8] sm:$0xff]
          %v706 = vld [vmem:[#allocation2 + $0x10] sm:$0xff]
          %v707 = vld [vmem:[#allocation2 + $0x18] sm:$0xff]
          %v708 = vld [vmem:[#allocation2 + $0x20] sm:$0xff]
          %v709 = vld [vmem:[#allocation2 + $0x28] sm:$0xff]
          %v710 = vld [vmem:[#allocation2 + $0x30] sm:$0xff]
          %v711 = vld [vmem:[#allocation2 + $0x38] sm:$0xff]
          %v712 = vld [vmem:[#allocation2 + $0x40] sm:$0xff]
          %v713 = vld [vmem:[#allocation2 + $0x48] sm:$0xff]
          %v714 = vld [vmem:[#allocation2 + $0x50] sm:$0xff]
          %v715 = vld [vmem:[#allocation2 + $0x58] sm:$0xff]
          %v716 = vld [vmem:[#allocation2 + $0x60] sm:$0xff]
          %v717 = vld [vmem:[#allocation2 + $0x68] sm:$0xff]
          %v718 = vld [vmem:[#allocation2 + $0x70] sm:$0xff]
          %v719 = vld [vmem:[#allocation2 + $0x78] sm:$0xff]
          %v720 = vld [vmem:[%s355] sm:$0xf]
          %v721 = vld [vmem:[%s355 + $0x4] sm:$0xf]
          %v722 = vld [vmem:[%s355 + $0x8] sm:$0xf]
          %v723 = vld [vmem:[%s355 + $0xc] sm:$0xf]
          %v724 = vld [vmem:[%s355 + $0x10] sm:$0xf]
          %v725 = vld [vmem:[%s355 + $0x14] sm:$0xf]
          %v726 = vld [vmem:[%s355 + $0x18] sm:$0xf]
          %v727 = vld [vmem:[%s355 + $0x1c] sm:$0xf]
          %v728 = vld [vmem:[%s355 + $0x20] sm:$0xf]
          %v729 = vld [vmem:[%s355 + $0x24] sm:$0xf]
          %v730 = vld [vmem:[%s355 + $0x28] sm:$0xf]
          %v731 = vld [vmem:[%s355 + $0x2c] sm:$0xf]
          %v732 = vld [vmem:[%s355 + $0x30] sm:$0xf]
          %v733 = vld [vmem:[%s355 + $0x34] sm:$0xf]
          %v734 = vld [vmem:[%s355 + $0x38] sm:$0xf]
          %v735 = vld [vmem:[%s355 + $0x3c] sm:$0xf]
          %v736 = vld [vmem:[%s364] sm:$0xf]
          %v737 = vld [vmem:[%s364 + $0x4] sm:$0xf]
          %v738 = vld [vmem:[%s364 + $0x8] sm:$0xf]
          %v739 = vld [vmem:[%s364 + $0xc] sm:$0xf]
          %v740 = vld [vmem:[%s364 + $0x10] sm:$0xf]
          %v741 = vld [vmem:[%s364 + $0x14] sm:$0xf]
          %v742 = vld [vmem:[%s364 + $0x18] sm:$0xf]
          %v743 = vld [vmem:[%s364 + $0x1c] sm:$0xf]
          %v744 = vld [vmem:[%s364 + $0x20] sm:$0xf]
          %v745 = vld [vmem:[%s364 + $0x24] sm:$0xf]
          %v746 = vld [vmem:[%s364 + $0x28] sm:$0xf]
          %v747 = vld [vmem:[%s364 + $0x2c] sm:$0xf]
          %v748 = vld [vmem:[%s364 + $0x30] sm:$0xf]
          %v749 = vld [vmem:[%s364 + $0x34] sm:$0xf]
          %v750 = vld [vmem:[%s364 + $0x38] sm:$0xf]
          %v751 = vld [vmem:[%s364 + $0x3c] sm:$0xf]
          %v768 = vunpack.c.l.b16 %v720
          %v769 = vunpack.c.l.b16 %v721
          %v770 = vunpack.c.l.b16 %v722
          %v771 = vunpack.c.l.b16 %v723
          %v772 = vunpack.c.l.b16 %v724
          %v773 = vunpack.c.l.b16 %v725
          %v774 = vunpack.c.l.b16 %v726
          %v775 = vunpack.c.l.b16 %v727
          %v776 = vunpack.c.l.b16 %v728
          %v777 = vunpack.c.l.b16 %v729
          %v778 = vunpack.c.l.b16 %v730
          %v779 = vunpack.c.l.b16 %v731
          %v780 = vunpack.c.l.b16 %v732
          %v781 = vunpack.c.l.b16 %v733
          %v782 = vunpack.c.l.b16 %v734
          %v783 = vunpack.c.l.b16 %v735
          %v784 = vpack.c.b16 %v769, %v768
          %v785 = vpack.c.b16 %v771, %v770
          %v786 = vpack.c.b16 %v773, %v772
          %v787 = vpack.c.b16 %v775, %v774
          %v788 = vpack.c.b16 %v777, %v776
          %v789 = vpack.c.b16 %v779, %v778
          %v790 = vpack.c.b16 %v781, %v780
          %v791 = vpack.c.b16 %v783, %v782
          %v816 = vunpack.c.l.b16 %v736
          %v817 = vunpack.c.l.b16 %v737
          %v818 = vunpack.c.l.b16 %v738
          %v819 = vunpack.c.l.b16 %v739
          %v820 = vunpack.c.l.b16 %v740
          %v821 = vunpack.c.l.b16 %v741
          %v822 = vunpack.c.l.b16 %v742
          %v823 = vunpack.c.l.b16 %v743
          %v824 = vunpack.c.l.b16 %v744
          %v825 = vunpack.c.l.b16 %v745
          %v826 = vunpack.c.l.b16 %v746
          %v827 = vunpack.c.l.b16 %v747
          %v828 = vunpack.c.l.b16 %v748
          %v829 = vunpack.c.l.b16 %v749
          %v830 = vunpack.c.l.b16 %v750
          %v831 = vunpack.c.l.b16 %v751
          %v832 = vpack.c.b16 %v817, %v816
          %v833 = vpack.c.b16 %v819, %v818
          %v834 = vpack.c.b16 %v821, %v820
          %v835 = vpack.c.b16 %v823, %v822
          %v836 = vpack.c.b16 %v825, %v824
          %v837 = vpack.c.b16 %v827, %v826
          %v838 = vpack.c.b16 %v829, %v828
          %v839 = vpack.c.b16 %v831, %v830
          %848 = vmatprep.subr.bf16.mxu0 0
          %849 = vmatpush1.bf16.msra.mxu0 %v832
          %850 = vmatprep.subr.bf16.mxu0 0
          %851 = vmatpush1.bf16.msra.mxu0 %v833
          %852 = vmatprep.subr.bf16.mxu0 0
          %853 = vmatpush1.bf16.msra.mxu0 %v834
          %854 = vmatprep.subr.bf16.mxu0 0
          %855 = vmatpush1.bf16.msra.mxu0 %v835
          %856 = vmatprep.subr.bf16.mxu0 0
          %857 = vmatpush1.bf16.msra.mxu0 %v836
          %858 = vmatprep.subr.bf16.mxu0 0
          %859 = vmatpush1.bf16.msra.mxu0 %v837
          %860 = vmatprep.subr.bf16.mxu0 0
          %861 = vmatpush1.bf16.msra.mxu0 %v838
          %862 = vmatprep.subr.bf16.mxu0 0
          %863 = vmatpush1.bf16.msra.mxu0 %v839
          %864 = vmatprep.subr.bf16.mxu0 0
          %865 = vmatpush1.bf16.msra.mxu0 0
          %866 = vmatprep.subr.bf16.mxu0 0
          %867 = vmatpush1.bf16.msra.mxu0 0
          %868 = vmatprep.subr.bf16.mxu0 0
          %869 = vmatpush1.bf16.msra.mxu0 0
          %870 = vmatprep.subr.bf16.mxu0 0
          %871 = vmatpush1.bf16.msra.mxu0 0
          %872 = vmatprep.subr.bf16.mxu0 0
          %873 = vmatpush1.bf16.msra.mxu0 0
          %874 = vmatprep.subr.bf16.mxu0 0
          %875 = vmatpush1.bf16.msra.mxu0 0
          %876 = vmatprep.subr.bf16.mxu0 0
          %877 = vmatpush1.bf16.msra.mxu0 0
          %878 = vmatprep.subr.bf16.mxu0 0
          %879 = vmatpush1.bf16.msra.mxu0 0
          %880 = vmatprep.mubr.bf16.mxu0 0
          %881 = vmatmul.mubr.bf16.gmra.mrb[0].mxu0 %v784
          %v882 = vpop.f32.mrb[0].mxu0
          %v883 = vadd.f32 0.0, %v882
          %v884 = vpop.f32.mrb[0].mxu0
          %v885 = vpop.f32.mrb[0].mxu0
          %v886 = vadd.f32 0.0, %v885
          %v887 = vpop.f32.mrb[0].mxu0
          %888 = vmatprep.mubr.bf16.mxu0 0
          %889 = vmatmul.mubr.bf16.gmra.mrb[0].mxu0 %v785
          %v890 = vpop.f32.mrb[0].mxu0
          %v891 = vadd.f32 0.0, %v890
          %v892 = vpop.f32.mrb[0].mxu0
          %v893 = vpop.f32.mrb[0].mxu0
          %v894 = vadd.f32 0.0, %v893
          %v895 = vpop.f32.mrb[0].mxu0
          %896 = vmatprep.mubr.bf16.mxu0 0
          %897 = vmatmul.mubr.bf16.gmra.mrb[0].mxu0 %v786
          %v898 = vpop.f32.mrb[0].mxu0
          %v899 = vadd.f32 0.0, %v898
          %v900 = vpop.f32.mrb[0].mxu0
          %v901 = vpop.f32.mrb[0].mxu0
          %v902 = vadd.f32 0.0, %v901
          %v903 = vpop.f32.mrb[0].mxu0
          %904 = vmatprep.mubr.bf16.mxu0 0
          %905 = vmatmul.mubr.bf16.gmra.mrb[0].mxu0 %v787
          %v906 = vpop.f32.mrb[0].mxu0
          %v907 = vadd.f32 0.0, %v906
          %v908 = vpop.f32.mrb[0].mxu0
          %v909 = vpop.f32.mrb[0].mxu0
          %v910 = vadd.f32 0.0, %v909
          %v911 = vpop.f32.mrb[0].mxu0
          %912 = vmatprep.mubr.bf16.mxu0 0
          %913 = vmatmul.mubr.bf16.gmra.mrb[0].mxu0 %v788
          %v914 = vpop.f32.mrb[0].mxu0
          %v915 = vadd.f32 0.0, %v914
          %v916 = vpop.f32.mrb[0].mxu0
          %v917 = vpop.f32.mrb[0].mxu0
          %v918 = vadd.f32 0.0, %v917
          %v919 = vpop.f32.mrb[0].mxu0
          %920 = vmatprep.mubr.bf16.mxu0 0
          %921 = vmatmul.mubr.bf16.gmra.mrb[0].mxu0 %v789
          %v922 = vpop.f32.mrb[0].mxu0
          %v923 = vadd.f32 0.0, %v922
          %v924 = vpop.f32.mrb[0].mxu0
          %v925 = vpop.f32.mrb[0].mxu0
          %v926 = vadd.f32 0.0, %v925
          %v927 = vpop.f32.mrb[0].mxu0
          %928 = vmatprep.mubr.bf16.mxu0 0
          %929 = vmatmul.mubr.bf16.gmra.mrb[0].mxu0 %v790
          %v930 = vpop.f32.mrb[0].mxu0
          %v931 = vadd.f32 0.0, %v930
          %v932 = vpop.f32.mrb[0].mxu0
          %v933 = vpop.f32.mrb[0].mxu0
          %v934 = vadd.f32 0.0, %v933
          %v935 = vpop.f32.mrb[0].mxu0
          %936 = vmatprep.mubr.bf16.mxu0 0
          %937 = vmatmul.mubr.bf16.gmra.mrb[0].mxu0 %v791
          %v938 = vpop.f32.mrb[0].mxu0
          %v939 = vadd.f32 0.0, %v938
          %v940 = vpop.f32.mrb[0].mxu0
          %v941 = vpop.f32.mrb[0].mxu0
          %v942 = vadd.f32 0.0, %v941
          %v943 = vpop.f32.mrb[0].mxu0
          %944 = vdwg.mxu0
          %v945 = vadd.f32 %v704, %v883
          %v946 = vadd.f32 %v705, %v886
          %v947 = vadd.f32 %v706, %v891
          %v948 = vadd.f32 %v707, %v894
          %v949 = vadd.f32 %v708, %v899
          %v950 = vadd.f32 %v709, %v902
          %v951 = vadd.f32 %v710, %v907
          %v952 = vadd.f32 %v711, %v910
          %v953 = vadd.f32 %v712, %v915
          %v954 = vadd.f32 %v713, %v918
          %v955 = vadd.f32 %v714, %v923
          %v956 = vadd.f32 %v715, %v926
          %v957 = vadd.f32 %v716, %v931
          %v958 = vadd.f32 %v717, %v934
          %v959 = vadd.f32 %v718, %v939
          %v960 = vadd.f32 %v719, %v942
          %961 = vst [vmem:[#allocation2] sm:$0xff] %v945
          %962 = vst [vmem:[#allocation2 + $0x8] sm:$0xff] %v946
          %963 = vst [vmem:[#allocation2 + $0x10] sm:$0xff] %v947
          %964 = vst [vmem:[#allocation2 + $0x18] sm:$0xff] %v948
          %965 = vst [vmem:[#allocation2 + $0x20] sm:$0xff] %v949
          %966 = vst [vmem:[#allocation2 + $0x28] sm:$0xff] %v950
          %967 = vst [vmem:[#allocation2 + $0x30] sm:$0xff] %v951
          %968 = vst [vmem:[#allocation2 + $0x38] sm:$0xff] %v952
          %969 = vst [vmem:[#allocation2 + $0x40] sm:$0xff] %v953
          %970 = vst [vmem:[#allocation2 + $0x48] sm:$0xff] %v954
          %971 = vst [vmem:[#allocation2 + $0x50] sm:$0xff] %v955
          %972 = vst [vmem:[#allocation2 + $0x58] sm:$0xff] %v956
          %973 = vst [vmem:[#allocation2 + $0x60] sm:$0xff] %v957
          %974 = vst [vmem:[#allocation2 + $0x68] sm:$0xff] %v958
          %975 = vst [vmem:[#allocation2 + $0x70] sm:$0xff] %v959
          %976 = vst [vmem:[#allocation2 + $0x78] sm:$0xff] %v960
        $region72: #{tpu_custom_call.1} parent=43 // pred_fallthru
          _
        %p977 = scmp.eq.s32.totalorder %s42, 1
        // Predicated region
        $region73: #{tpu_custom_call.1} parent=43 // pred_check
          %p978 = pneg %p977
        $region74: #{tpu_custom_call.1} parent=43 // pred_check_branch
          %980 = sbr.rel (%p978) target = $region76
        $region75: #{tpu_custom_call.1} parent=43 // pred_region
          %v981 = vld [vmem:[#allocation3] sm:$0xff]
          %v982 = vld [vmem:[#allocation3 + $0x8] sm:$0xff]
          %v983 = vld [vmem:[#allocation3 + $0x10] sm:$0xff]
          %v984 = vld [vmem:[#allocation3 + $0x18] sm:$0xff]
          %v985 = vld [vmem:[#allocation3 + $0x20] sm:$0xff]
          %v986 = vld [vmem:[#allocation3 + $0x28] sm:$0xff]
          %v987 = vld [vmem:[#allocation3 + $0x30] sm:$0xff]
          %v988 = vld [vmem:[#allocation3 + $0x38] sm:$0xff]
          %v989 = vld [vmem:[#allocation3 + $0x40] sm:$0xff]
          %v990 = vld [vmem:[#allocation3 + $0x48] sm:$0xff]
          %v991 = vld [vmem:[#allocation3 + $0x50] sm:$0xff]
          %v992 = vld [vmem:[#allocation3 + $0x58] sm:$0xff]
          %v993 = vld [vmem:[#allocation3 + $0x60] sm:$0xff]
          %v994 = vld [vmem:[#allocation3 + $0x68] sm:$0xff]
          %v995 = vld [vmem:[#allocation3 + $0x70] sm:$0xff]
          %v996 = vld [vmem:[#allocation3 + $0x78] sm:$0xff]
          %v997 = vld [vmem:[#allocation2] sm:$0xff]
          %v998 = vld [vmem:[#allocation2 + $0x8] sm:$0xff]
          %v999 = vld [vmem:[#allocation2 + $0x10] sm:$0xff]
          %v1000 = vld [vmem:[#allocation2 + $0x18] sm:$0xff]
          %v1001 = vld [vmem:[#allocation2 + $0x20] sm:$0xff]
          %v1002 = vld [vmem:[#allocation2 + $0x28] sm:$0xff]
          %v1003 = vld [vmem:[#allocation2 + $0x30] sm:$0xff]
          %v1004 = vld [vmem:[#allocation2 + $0x38] sm:$0xff]
          %v1005 = vld [vmem:[#allocation2 + $0x40] sm:$0xff]
          %v1006 = vld [vmem:[#allocation2 + $0x48] sm:$0xff]
          %v1007 = vld [vmem:[#allocation2 + $0x50] sm:$0xff]
          %v1008 = vld [vmem:[#allocation2 + $0x58] sm:$0xff]
          %v1009 = vld [vmem:[#allocation2 + $0x60] sm:$0xff]
          %v1010 = vld [vmem:[#allocation2 + $0x68] sm:$0xff]
          %v1011 = vld [vmem:[#allocation2 + $0x70] sm:$0xff]
          %v1012 = vld [vmem:[#allocation2 + $0x78] sm:$0xff]
          %v1013 = vpack.c.bf16 %v998, %v997
          %v1014 = vpack.c.bf16 %v1000, %v999
          %v1015 = vpack.c.bf16 %v1002, %v1001
          %v1016 = vpack.c.bf16 %v1004, %v1003
          %v1017 = vpack.c.bf16 %v1006, %v1005
          %v1018 = vpack.c.bf16 %v1008, %v1007
          %v1019 = vpack.c.bf16 %v1010, %v1009
          %v1020 = vpack.c.bf16 %v1012, %v1011
          %v1021 = vld [vmem:[#allocation15] sm:$0xf]
          %v1022 = vld [vmem:[#allocation15 + $0x4] sm:$0xf]
          %v1023 = vld [vmem:[#allocation15 + $0x8] sm:$0xf]
          %v1024 = vld [vmem:[#allocation15 + $0xc] sm:$0xf]
          %v1025 = vld [vmem:[#allocation15 + $0x10] sm:$0xf]
          %v1026 = vld [vmem:[#allocation15 + $0x14] sm:$0xf]
          %v1027 = vld [vmem:[#allocation15 + $0x18] sm:$0xf]
          %v1028 = vld [vmem:[#allocation15 + $0x1c] sm:$0xf]
          %v1029 = vld [vmem:[#allocation15 + $0x20] sm:$0xf]
          %v1030 = vld [vmem:[#allocation15 + $0x24] sm:$0xf]
          %v1031 = vld [vmem:[#allocation15 + $0x28] sm:$0xf]
          %v1032 = vld [vmem:[#allocation15 + $0x2c] sm:$0xf]
          %v1033 = vld [vmem:[#allocation15 + $0x30] sm:$0xf]
          %v1034 = vld [vmem:[#allocation15 + $0x34] sm:$0xf]
          %v1035 = vld [vmem:[#allocation15 + $0x38] sm:$0xf]
          %v1036 = vld [vmem:[#allocation15 + $0x3c] sm:$0xf]
          %v1053 = vunpack.c.l.b16 %v1021
          %v1054 = vunpack.c.l.b16 %v1022
          %v1055 = vunpack.c.l.b16 %v1023
          %v1056 = vunpack.c.l.b16 %v1024
          %v1057 = vunpack.c.l.b16 %v1025
          %v1058 = vunpack.c.l.b16 %v1026
          %v1059 = vunpack.c.l.b16 %v1027
          %v1060 = vunpack.c.l.b16 %v1028
          %v1061 = vunpack.c.l.b16 %v1029
          %v1062 = vunpack.c.l.b16 %v1030
          %v1063 = vunpack.c.l.b16 %v1031
          %v1064 = vunpack.c.l.b16 %v1032
          %v1065 = vunpack.c.l.b16 %v1033
          %v1066 = vunpack.c.l.b16 %v1034
          %v1067 = vunpack.c.l.b16 %v1035
          %v1068 = vunpack.c.l.b16 %v1036
          %v1069 = vpack.c.b16 %v1054, %v1053
          %v1070 = vpack.c.b16 %v1056, %v1055
          %v1071 = vpack.c.b16 %v1058, %v1057
          %v1072 = vpack.c.b16 %v1060, %v1059
          %v1073 = vpack.c.b16 %v1062, %v1061
          %v1074 = vpack.c.b16 %v1064, %v1063
          %v1075 = vpack.c.b16 %v1066, %v1065
          %v1076 = vpack.c.b16 %v1068, %v1067
          %1085 = vmatprep.subr.bf16.mxu0 0
          %1086 = vmatpush1.bf16.msra.mxu0 %v1069
          %1087 = vmatprep.subr.bf16.mxu0 0
          %1088 = vmatpush1.bf16.msra.mxu0 %v1070
          %1089 = vmatprep.subr.bf16.mxu0 0
          %1090 = vmatpush1.bf16.msra.mxu0 %v1071
          %1091 = vmatprep.subr.bf16.mxu0 0
          %1092 = vmatpush1.bf16.msra.mxu0 %v1072
          %1093 = vmatprep.subr.bf16.mxu0 0
          %1094 = vmatpush1.bf16.msra.mxu0 %v1073
          %1095 = vmatprep.subr.bf16.mxu0 0
          %1096 = vmatpush1.bf16.msra.mxu0 %v1074
          %1097 = vmatprep.subr.bf16.mxu0 0
          %1098 = vmatpush1.bf16.msra.mxu0 %v1075
          %1099 = vmatprep.subr.bf16.mxu0 0
          %1100 = vmatpush1.bf16.msra.mxu0 %v1076
          %1101 = vmatprep.subr.bf16.mxu0 0
          %1102 = vmatpush1.bf16.msra.mxu0 0
          %1103 = vmatprep.subr.bf16.mxu0 0
          %1104 = vmatpush1.bf16.msra.mxu0 0
          %1105 = vmatprep.subr.bf16.mxu0 0
          %1106 = vmatpush1.bf16.msra.mxu0 0
          %1107 = vmatprep.subr.bf16.mxu0 0
          %1108 = vmatpush1.bf16.msra.mxu0 0
          %1109 = vmatprep.subr.bf16.mxu0 0
          %1110 = vmatpush1.bf16.msra.mxu0 0
          %1111 = vmatprep.subr.bf16.mxu0 0
          %1112 = vmatpush1.bf16.msra.mxu0 0
          %1113 = vmatprep.subr.bf16.mxu0 0
          %1114 = vmatpush1.bf16.msra.mxu0 0
          %1115 = vmatprep.subr.bf16.mxu0 0
          %1116 = vmatpush1.bf16.msra.mxu0 0
          %1117 = vmatprep.mubr.bf16.mxu0 0
          %1118 = vmatmul.mubr.bf16.gmra.mrb[0].mxu0 %v1013
          %v1119 = vpop.f32.mrb[0].mxu0
          %v1120 = vadd.f32 0.0, %v1119
          %v1121 = vpop.f32.mrb[0].mxu0
          %v1122 = vpop.f32.mrb[0].mxu0
          %v1123 = vadd.f32 0.0, %v1122
          %v1124 = vpop.f32.mrb[0].mxu0
          %1125 = vmatprep.mubr.bf16.mxu0 0
          %1126 = vmatmul.mubr.bf16.gmra.mrb[0].mxu0 %v1014
          %v1127 = vpop.f32.mrb[0].mxu0
          %v1128 = vadd.f32 0.0, %v1127
          %v1129 = vpop.f32.mrb[0].mxu0
          %v1130 = vpop.f32.mrb[0].mxu0
          %v1131 = vadd.f32 0.0, %v1130
          %v1132 = vpop.f32.mrb[0].mxu0
          %1133 = vmatprep.mubr.bf16.mxu0 0
          %1134 = vmatmul.mubr.bf16.gmra.mrb[0].mxu0 %v1015
          %v1135 = vpop.f32.mrb[0].mxu0
          %v1136 = vadd.f32 0.0, %v1135
          %v1137 = vpop.f32.mrb[0].mxu0
          %v1138 = vpop.f32.mrb[0].mxu0
          %v1139 = vadd.f32 0.0, %v1138
          %v1140 = vpop.f32.mrb[0].mxu0
          %1141 = vmatprep.mubr.bf16.mxu0 0
          %1142 = vmatmul.mubr.bf16.gmra.mrb[0].mxu0 %v1016
          %v1143 = vpop.f32.mrb[0].mxu0
          %v1144 = vadd.f32 0.0, %v1143
          %v1145 = vpop.f32.mrb[0].mxu0
          %v1146 = vpop.f32.mrb[0].mxu0
          %v1147 = vadd.f32 0.0, %v1146
          %v1148 = vpop.f32.mrb[0].mxu0
          %1149 = vmatprep.mubr.bf16.mxu0 0
          %1150 = vmatmul.mubr.bf16.gmra.mrb[0].mxu0 %v1017
          %v1151 = vpop.f32.mrb[0].mxu0
          %v1152 = vadd.f32 0.0, %v1151
          %v1153 = vpop.f32.mrb[0].mxu0
          %v1154 = vpop.f32.mrb[0].mxu0
          %v1155 = vadd.f32 0.0, %v1154
          %v1156 = vpop.f32.mrb[0].mxu0
          %1157 = vmatprep.mubr.bf16.mxu0 0
          %1158 = vmatmul.mubr.bf16.gmra.mrb[0].mxu0 %v1018
          %v1159 = vpop.f32.mrb[0].mxu0
          %v1160 = vadd.f32 0.0, %v1159
          %v1161 = vpop.f32.mrb[0].mxu0
          %v1162 = vpop.f32.mrb[0].mxu0
          %v1163 = vadd.f32 0.0, %v1162
          %v1164 = vpop.f32.mrb[0].mxu0
          %1165 = vmatprep.mubr.bf16.mxu0 0
          %1166 = vmatmul.mubr.bf16.gmra.mrb[0].mxu0 %v1019
          %v1167 = vpop.f32.mrb[0].mxu0
          %v1168 = vadd.f32 0.0, %v1167
          %v1169 = vpop.f32.mrb[0].mxu0
          %v1170 = vpop.f32.mrb[0].mxu0
          %v1171 = vadd.f32 0.0, %v1170
          %v1172 = vpop.f32.mrb[0].mxu0
          %1173 = vmatprep.mubr.bf16.mxu0 0
          %1174 = vmatmul.mubr.bf16.gmra.mrb[0].mxu0 %v1020
          %v1175 = vpop.f32.mrb[0].mxu0
          %v1176 = vadd.f32 0.0, %v1175
          %v1177 = vpop.f32.mrb[0].mxu0
          %v1178 = vpop.f32.mrb[0].mxu0
          %v1179 = vadd.f32 0.0, %v1178
          %v1180 = vpop.f32.mrb[0].mxu0
          %1181 = vdwg.mxu0
          %v1182 = vadd.f32 %v981, %v1120
          %v1183 = vadd.f32 %v982, %v1123
          %v1184 = vadd.f32 %v983, %v1128
          %v1185 = vadd.f32 %v984, %v1131
          %v1186 = vadd.f32 %v985, %v1136
          %v1187 = vadd.f32 %v986, %v1139
          %v1188 = vadd.f32 %v987, %v1144
          %v1189 = vadd.f32 %v988, %v1147
          %v1190 = vadd.f32 %v989, %v1152
          %v1191 = vadd.f32 %v990, %v1155
          %v1192 = vadd.f32 %v991, %v1160
          %v1193 = vadd.f32 %v992, %v1163
          %v1194 = vadd.f32 %v993, %v1168
          %v1195 = vadd.f32 %v994, %v1171
          %v1196 = vadd.f32 %v995, %v1176
          %v1197 = vadd.f32 %v996, %v1179
          %v1198 = vmax.f32 %v1182, 0.0
          %v1199 = vmax.f32 %v1183, 0.0
          %v1200 = vmax.f32 %v1184, 0.0
          %v1201 = vmax.f32 %v1185, 0.0
          %v1202 = vmax.f32 %v1186, 0.0
          %v1203 = vmax.f32 %v1187, 0.0
          %v1204 = vmax.f32 %v1188, 0.0
          %v1205 = vmax.f32 %v1189, 0.0
          %v1206 = vmax.f32 %v1190, 0.0
          %v1207 = vmax.f32 %v1191, 0.0
          %v1208 = vmax.f32 %v1192, 0.0
          %v1209 = vmax.f32 %v1193, 0.0
          %v1210 = vmax.f32 %v1194, 0.0
          %v1211 = vmax.f32 %v1195, 0.0
          %v1212 = vmax.f32 %v1196, 0.0
          %v1213 = vmax.f32 %v1197, 0.0
          %v1214 = vpack.c.bf16 %v1199, %v1198
          %v1215 = vpack.c.bf16 %v1201, %v1200
          %v1216 = vpack.c.bf16 %v1203, %v1202
          %v1217 = vpack.c.bf16 %v1205, %v1204
          %v1218 = vpack.c.bf16 %v1207, %v1206
          %v1219 = vpack.c.bf16 %v1209, %v1208
          %v1220 = vpack.c.bf16 %v1211, %v1210
          %v1221 = vpack.c.bf16 %v1213, %v1212
          %v1230 = vunpack.c.l.b16 %v1214
          %v1231 = vunpack.c.h.b16 %v1214
          %v1232 = vunpack.c.l.b16 %v1215
          %v1233 = vunpack.c.h.b16 %v1215
          %v1234 = vunpack.c.l.b16 %v1216
          %v1235 = vunpack.c.h.b16 %v1216
          %v1236 = vunpack.c.l.b16 %v1217
          %v1237 = vunpack.c.h.b16 %v1217
          %v1238 = vunpack.c.l.b16 %v1218
          %v1239 = vunpack.c.h.b16 %v1218
          %v1240 = vunpack.c.l.b16 %v1219
          %v1241 = vunpack.c.h.b16 %v1219
          %v1242 = vunpack.c.l.b16 %v1220
          %v1243 = vunpack.c.h.b16 %v1220
          %v1244 = vunpack.c.l.b16 %v1221
          %v1245 = vunpack.c.h.b16 %v1221
          %v1246 = vpack.c.b16 %v1230, %v1230
          %v1247 = vpack.c.b16 %v1231, %v1231
          %v1248 = vpack.c.b16 %v1232, %v1232
          %v1249 = vpack.c.b16 %v1233, %v1233
          %v1250 = vpack.c.b16 %v1234, %v1234
          %v1251 = vpack.c.b16 %v1235, %v1235
          %v1252 = vpack.c.b16 %v1236, %v1236
          %v1253 = vpack.c.b16 %v1237, %v1237
          %v1254 = vpack.c.b16 %v1238, %v1238
          %v1255 = vpack.c.b16 %v1239, %v1239
          %v1256 = vpack.c.b16 %v1240, %v1240
          %v1257 = vpack.c.b16 %v1241, %v1241
          %v1258 = vpack.c.b16 %v1242, %v1242
          %v1259 = vpack.c.b16 %v1243, %v1243
          %v1260 = vpack.c.b16 %v1244, %v1244
          %v1261 = vpack.c.b16 %v1245, %v1245
          %1278 = vst [vmem:[%s419] sm:$0xf] %v1246
          %1279 = vst [vmem:[%s419 + $0x4] sm:$0xf] %v1247
          %1280 = vst [vmem:[%s419 + $0x8] sm:$0xf] %v1248
          %1281 = vst [vmem:[%s419 + $0xc] sm:$0xf] %v1249
          %1282 = vst [vmem:[%s419 + $0x10] sm:$0xf] %v1250
          %1283 = vst [vmem:[%s419 + $0x14] sm:$0xf] %v1251
          %1284 = vst [vmem:[%s419 + $0x18] sm:$0xf] %v1252
          %1285 = vst [vmem:[%s419 + $0x1c] sm:$0xf] %v1253
          %1286 = vst [vmem:[%s419 + $0x20] sm:$0xf] %v1254
          %1287 = vst [vmem:[%s419 + $0x24] sm:$0xf] %v1255
          %1288 = vst [vmem:[%s419 + $0x28] sm:$0xf] %v1256
          %1289 = vst [vmem:[%s419 + $0x2c] sm:$0xf] %v1257
          %1290 = vst [vmem:[%s419 + $0x30] sm:$0xf] %v1258
          %1291 = vst [vmem:[%s419 + $0x34] sm:$0xf] %v1259
          %1292 = vst [vmem:[%s419 + $0x38] sm:$0xf] %v1260
          %1293 = vst [vmem:[%s419 + $0x3c] sm:$0xf] %v1261
        $region76: #{tpu_custom_call.1} parent=43 // pred_fallthru
          _
        %s1294 = sand.u32 %s212, 1
        %s1295 = scalar_lea.sflag [#allocation9], %s1294
        %s1296 = sand.u32 %s212, 1
        %s1297 = smul.addr %s1296, 64
        %s1298 = scalar_lea.vmem [#allocation16], %s1297
        // Predicated region
        $region77: #{tpu_custom_call.1} parent=43 // pred_check
          %p1299 = pneg %p222
        $region78: #{tpu_custom_call.1} parent=43 // pred_check_branch
          %1301 = sbr.rel (%p1299) target = $region80
        $region79: #{tpu_custom_call.1} parent=43 // pred_region
          %s1302 = smul.u32 16, %s41
          %s1304 = ssub.s32 1024, 1024
          %1305 = vsyncadd %s1295, %s1304
          %s1306 = smul.addr %s1302, 64
          %s1307 = scalar_lea.hbm %s8, %s1306
          %s1308 = sshll.u32 %s1298, 4
          %s1309 = int_to_ptr.vmem [resolvable:$true] %s1308
          %1314 = dma.vmem_to_hbm [thread:$0]  %s1309, 1024, %s1307, %s1295, 64, 64, 4
        $region80: #{tpu_custom_call.1} parent=43 // pred_fallthru
          _
      $region44: #{tpu_custom_call.1} parent=5 // pred_fallthru
        _
      %p1315 = scmp.le.s32.totalorder 2, %s32
      // Predicated region
      $region81: #{tpu_custom_call.1} parent=5 // pred_check
        %p1316 = pneg %p1315
      $region82: #{tpu_custom_call.1} parent=5 // pred_check_branch
        %1318 = sbr.rel (%p1316) target = $region84
      $region83: #{tpu_custom_call.1} parent=5 // pred_region
        %s1319 = ssub.s32 %s32, 2
        // Predicated region
        $region85: #{tpu_custom_call.1} parent=83 // pred_check
          %p1320 = pneg %p228
        $region86: #{tpu_custom_call.1} parent=83 // pred_check_branch
          %1322 = sbr.rel (%p1320) target = $region88
        $region87: #{tpu_custom_call.1} parent=83 // pred_region
          %s1323 = sand.u32 %s213, 1
          %s1324 = scalar_lea.sflag [#allocation9], %s1323
          %s1325 = sand.u32 %s213, 1
          %s1326 = smul.addr %s1325, 64
          %s1327 = scalar_lea.vmem [#allocation16], %s1326
          %1328 = dma.done %s1324, 1024
        $region88: #{tpu_custom_call.1} parent=83 // pred_fallthru
          _
      $region84: #{tpu_custom_call.1} parent=5 // pred_fallthru
        _
    $region6: #{tpu_custom_call.1} parent=1 // loop_footer
      %s36 = sadd.s32 1, %s32
    $region7: #{tpu_custom_call.1} parent=1 // loop_footer_branch
      %31 = sbr.rel target = $region3
    $region8: #{tpu_custom_call.1} parent=1 // loop_exit
      _
    %1329 = vsyncpa [#allocation8], 1
    %s1330 = scalar_lea.sflag [#allocation8], 1
    %1331 = vsyncpa %s1330, 1
    %1332 = vsyncpa [#allocation11], 1
    %s1333 = scalar_lea.sflag [#allocation11], 1
    %1334 = vsyncpa %s1333, 1
    %1335 = vsyncpa [#allocation14], 1
    %1336 = vsyncpa [#allocation9], 1
    %s1337 = scalar_lea.sflag [#allocation9], 1
    %1338 = vsyncpa %s1337, 1

</llo_original>
